<compile_context>
chip_gen: v6e
topology: v6e:2x2x1
jax: 0.10.0
libtpu: 0.0.40
codegen_flags: <defaults>
</compile_context>

<pallas_src>
import jax
import jax.numpy as jnp
from jax.experimental import pallas as pl
from jax.experimental.pallas import tpu as pltpu

H = W = 64        # spatial size of the module's input
KH = KW = 5       # conv kernel
PAD = 2           # 'same' padding
C_IN = 1
C_OUT = 2
N_REPEAT = 5      # the conv is applied 5 times and summed


def conv5_sum_relu_kernel(x_ref, w_ref, b_ref, o_ref):
    # x_ref : (64, 64)      f32 VMEM  input plane
    # w_ref : (5, 128, 64)  f32 VMEM  banded per-dj weights: w_ref[dj, c*64+h, r]
    #                                 = conv.weight[c, 0, r-h+2, dj] (0 outside band)
    # b_ref : (2,)          f32 SMEM  raw conv bias
    # o_ref : (2, 64, 64)   f32 VMEM  NCHW channel planes of relu(5*(conv(x)+b))
    x = x_ref[...]                                                 # (64, 64)

    # Column indices for building exact 0/1 shift matrices in-kernel (VPU only).
    p_i = jax.lax.broadcasted_iota(jnp.int32, (W, W), 0)           # source col
    w_i = jax.lax.broadcasted_iota(jnp.int32, (W, W), 1)           # output col

    acc = jnp.zeros((C_OUT * H, W), jnp.float32)
    for dj in range(KW):
        if dj == PAD:
            s = x                                                  # no horizontal shift
        else:
            # s[r, w] = x[r, w + dj - PAD], zero where out of range (column padding),
            # done as an exact 0/1 matmul on the MXU -> no lane shuffles, no masks.
            shift = (p_i == w_i + (dj - PAD)).astype(jnp.float32)  # (64, 64)
            s = jnp.dot(x, shift, preferred_element_type=jnp.float32)
        # Banded weights contract over rows: folds the 5 vertical taps + row padding.
        acc = acc + jnp.dot(w_ref[dj], s, preferred_element_type=jnp.float32)

    row = jax.lax.broadcasted_iota(jnp.int32, (C_OUT * H, W), 0)
    bias = jnp.where(row < H, b_ref[0], b_ref[1])                  # per-channel bias
    out = jnp.maximum(float(N_REPEAT) * (acc + bias), 0.0)         # relu(5*(conv+b))

    # Channel-major rows -> NCHW planes; sublane-aligned value slices (free).
    o_ref[0] = out[:H]
    o_ref[1] = out[H:]


def prepare_params(weight, bias):
    """One-time packing: build the per-dj banded weight matrices.

    w_packed[dj, c*64 + h, r] = weight[c, 0, r - h + PAD, dj] if the tap is in
    band (0 <= r-h+PAD < KH) else 0.  Row padding of the conv is implicit in
    the band cut-off; the 5x repeat is applied in-kernel (scalar multiply) so
    the packed weights stay exactly the raw conv weights.
    """
    w = weight.astype(jnp.float32)[:, 0]                       # (2, 5, 5)
    h_idx = jnp.arange(H)[:, None]                             # (64, 1)
    r_idx = jnp.arange(H)[None, :]                             # (1, 64)
    di = r_idx - h_idx + PAD                                   # (64, 64)
    valid = (di >= 0) & (di < KH)
    di_c = jnp.clip(di, 0, KH - 1)
    band = jnp.where(valid[None, :, :, None], w[:, di_c, :], 0.0)   # (2,64,64,5)
    w_packed = band.transpose(3, 0, 1, 2).reshape(KW, C_OUT * H, H)  # (5,128,64)
    b_packed = bias.astype(jnp.float32)                        # (2,)
    return w_packed, b_packed


@jax.jit
def model_forward(x_nchw, w_packed, b_packed):
    """x_nchw: (1, 1, 64, 64) f32; w_packed/b_packed from prepare_params."""
    x_plane = x_nchw.reshape(H, W)          # free bitcast reshape (no transpose)

    out = pl.pallas_call(
        conv5_sum_relu_kernel,
        out_shape=jax.ShapeDtypeStruct((C_OUT, H, W), jnp.float32),
        in_specs=[
            pl.BlockSpec(memory_space=pltpu.MemorySpace.VMEM),   # x plane
            pl.BlockSpec(memory_space=pltpu.MemorySpace.VMEM),   # banded weights
            pl.BlockSpec(memory_space=pltpu.MemorySpace.SMEM),   # bias scalars
        ],
        out_specs=pl.BlockSpec(memory_space=pltpu.MemorySpace.VMEM),
        cost_estimate=pl.CostEstimate(
            flops=7_400_000, transcendentals=0, bytes_accessed=213_000),
    )(x_plane, w_packed, b_packed)                               # (2, 64, 64)

    return out[None]                         # (1, 2, 64, 64), free expand_dims


def _reference(x_nchw, weight, bias):
    conv = jax.lax.conv_general_dilated(
        x_nchw, weight, window_strides=(1, 1),
        padding=((PAD, PAD), (PAD, PAD)),
        dimension_numbers=("NCHW", "OIHW", "NCHW"),
        precision=jax.lax.Precision.HIGHEST)
    conv = conv + bias[None, :, None, None]
    return jax.nn.relu(float(N_REPEAT) * conv)


if __name__ == "__main__":
    key = jax.random.PRNGKey(0)
    kx, kw, kb = jax.random.split(key, 3)

    x1 = jax.random.normal(kx, (1, C_IN, H, W), dtype=jnp.float32)
    # Deterministic Conv2d(1, 2, 5) parameters (synthetic, not a checkpoint).
    fan_in = C_IN * KH * KW
    bound = 1.0 / (fan_in ** 0.5)
    weight = jax.random.uniform(kw, (C_OUT, C_IN, KH, KW),
                                minval=-bound, maxval=bound, dtype=jnp.float32)
    bias = jax.random.uniform(kb, (C_OUT,), minval=-bound, maxval=bound,
                              dtype=jnp.float32)

    # Snap test data to bf16-representable f32 values so the correctness check
    # is independent of how many bf16 passes the MXU uses for f32 matmuls
    # (products are then exact; only f32 accumulation-order noise remains).
    x1 = x1.astype(jnp.bfloat16).astype(jnp.float32)
    weight = weight.astype(jnp.bfloat16).astype(jnp.float32)
    bias = bias.astype(jnp.bfloat16).astype(jnp.float32)

    # One-time parameter packing (init time, not per call).
    w_packed, b_packed = prepare_params(weight, bias)
    w_packed, b_packed = jax.block_until_ready((w_packed, b_packed))

    out = model_forward(x1, w_packed, b_packed)
    out = jax.block_until_ready(out)

    ref = _reference(x1, weight, bias)
    assert out.shape == (1, C_OUT, H, W)
    assert jnp.allclose(out, ref, atol=1e-4, rtol=1e-4)
    print("KERNEL_OK")
</pallas_src>

<mosaic_0001>
module attributes {stable_mosaic.version = 11 : i64} {
  func.func @conv5_sum_relu_kernel(%arg0: memref<64x64xf32, #tpu.memory_space<vmem>>, %arg1: memref<5x128x64xf32, #tpu.memory_space<vmem>>, %arg2: memref<2xf32, #tpu.memory_space<smem>>, %arg3: memref<2x64x64xf32, #tpu.memory_space<vmem>>) attributes {dimension_semantics = [], scalar_prefetch = 0 : i64, scratch_operands = 0 : i64, tpu.core_type = #tpu.core_type<tc>} {
    %c0 = arith.constant 0 : index
    %c0_0 = arith.constant 0 : index
    %0 = vector.load %arg0[%c0, %c0_0] : memref<64x64xf32, #tpu.memory_space<vmem>>, vector<64x64xf32>
    %1 = tpu.iota {dimensions = array<i32: 0>} : vector<64x64xi32>
    %2 = tpu.iota {dimensions = array<i32: 1>} : vector<64x64xi32>
    %cst = arith.constant 0.000000e+00 : f32
    %3 = vector.broadcast %cst : f32 to vector<128x64xf32>
    %c-2_i32 = arith.constant -2 : i32
    %4 = vector.broadcast %c-2_i32 : i32 to vector<64x64xi32>
    %5 = arith.addi %2, %4 : vector<64x64xi32>
    %6 = arith.cmpi eq, %1, %5 : vector<64x64xi32>
    %7 = arith.extui %6 : vector<64x64xi1> to vector<64x64xi32>
    %8 = arith.sitofp %7 : vector<64x64xi32> to vector<64x64xf32>
    %cst_1 = arith.constant dense<0.000000e+00> : vector<64x64xf32>
    %9 = tpu.matmul %0, %8, %cst_1 {dimension_numbers = #tpu.dot_dimension_numbers<[1], [0], [0], [1], [0, 0, 1, 1], [], []>} : vector<64x64xf32>, vector<64x64xf32>, vector<64x64xf32> -> vector<64x64xf32>
    %c0_2 = arith.constant 0 : index
    %c0_3 = arith.constant 0 : index
    %c0_4 = arith.constant 0 : index
    %10 = vector.load %arg1[%c0_2, %c0_3, %c0_4] : memref<5x128x64xf32, #tpu.memory_space<vmem>>, vector<1x128x64xf32>
    %11 = vector.shape_cast %10 : vector<1x128x64xf32> to vector<128x64xf32>
    %cst_5 = arith.constant dense<0.000000e+00> : vector<128x64xf32>
    %12 = tpu.matmul %11, %9, %cst_5 {dimension_numbers = #tpu.dot_dimension_numbers<[1], [0], [0], [1], [0, 0, 1, 1], [], []>} : vector<128x64xf32>, vector<64x64xf32>, vector<128x64xf32> -> vector<128x64xf32>
    %13 = arith.addf %3, %12 : vector<128x64xf32>
    %c-1_i32 = arith.constant -1 : i32
    %14 = vector.broadcast %c-1_i32 : i32 to vector<64x64xi32>
    %15 = arith.addi %2, %14 : vector<64x64xi32>
    %16 = arith.cmpi eq, %1, %15 : vector<64x64xi32>
    %17 = arith.extui %16 : vector<64x64xi1> to vector<64x64xi32>
    %18 = arith.sitofp %17 : vector<64x64xi32> to vector<64x64xf32>
    %cst_6 = arith.constant dense<0.000000e+00> : vector<64x64xf32>
    %19 = tpu.matmul %0, %18, %cst_6 {dimension_numbers = #tpu.dot_dimension_numbers<[1], [0], [0], [1], [0, 0, 1, 1], [], []>} : vector<64x64xf32>, vector<64x64xf32>, vector<64x64xf32> -> vector<64x64xf32>
    %c1 = arith.constant 1 : index
    %c0_7 = arith.constant 0 : index
    %c0_8 = arith.constant 0 : index
    %20 = vector.load %arg1[%c1, %c0_7, %c0_8] : memref<5x128x64xf32, #tpu.memory_space<vmem>>, vector<1x128x64xf32>
    %21 = vector.shape_cast %20 : vector<1x128x64xf32> to vector<128x64xf32>
    %cst_9 = arith.constant dense<0.000000e+00> : vector<128x64xf32>
    %22 = tpu.matmul %21, %19, %cst_9 {dimension_numbers = #tpu.dot_dimension_numbers<[1], [0], [0], [1], [0, 0, 1, 1], [], []>} : vector<128x64xf32>, vector<64x64xf32>, vector<128x64xf32> -> vector<128x64xf32>
    %23 = arith.addf %13, %22 : vector<128x64xf32>
    %c2 = arith.constant 2 : index
    %c0_10 = arith.constant 0 : index
    %c0_11 = arith.constant 0 : index
    %24 = vector.load %arg1[%c2, %c0_10, %c0_11] : memref<5x128x64xf32, #tpu.memory_space<vmem>>, vector<1x128x64xf32>
    %25 = vector.shape_cast %24 : vector<1x128x64xf32> to vector<128x64xf32>
    %cst_12 = arith.constant dense<0.000000e+00> : vector<128x64xf32>
    %26 = tpu.matmul %25, %0, %cst_12 {dimension_numbers = #tpu.dot_dimension_numbers<[1], [0], [0], [1], [0, 0, 1, 1], [], []>} : vector<128x64xf32>, vector<64x64xf32>, vector<128x64xf32> -> vector<128x64xf32>
    %27 = arith.addf %23, %26 : vector<128x64xf32>
    %c1_i32 = arith.constant 1 : i32
    %28 = vector.broadcast %c1_i32 : i32 to vector<64x64xi32>
    %29 = arith.addi %2, %28 : vector<64x64xi32>
    %30 = arith.cmpi eq, %1, %29 : vector<64x64xi32>
    %31 = arith.extui %30 : vector<64x64xi1> to vector<64x64xi32>
    %32 = arith.sitofp %31 : vector<64x64xi32> to vector<64x64xf32>
    %cst_13 = arith.constant dense<0.000000e+00> : vector<64x64xf32>
    %33 = tpu.matmul %0, %32, %cst_13 {dimension_numbers = #tpu.dot_dimension_numbers<[1], [0], [0], [1], [0, 0, 1, 1], [], []>} : vector<64x64xf32>, vector<64x64xf32>, vector<64x64xf32> -> vector<64x64xf32>
    %c3 = arith.constant 3 : index
    %c0_14 = arith.constant 0 : index
    %c0_15 = arith.constant 0 : index
    %34 = vector.load %arg1[%c3, %c0_14, %c0_15] : memref<5x128x64xf32, #tpu.memory_space<vmem>>, vector<1x128x64xf32>
    %35 = vector.shape_cast %34 : vector<1x128x64xf32> to vector<128x64xf32>
    %cst_16 = arith.constant dense<0.000000e+00> : vector<128x64xf32>
    %36 = tpu.matmul %35, %33, %cst_16 {dimension_numbers = #tpu.dot_dimension_numbers<[1], [0], [0], [1], [0, 0, 1, 1], [], []>} : vector<128x64xf32>, vector<64x64xf32>, vector<128x64xf32> -> vector<128x64xf32>
    %37 = arith.addf %27, %36 : vector<128x64xf32>
    %c2_i32 = arith.constant 2 : i32
    %38 = vector.broadcast %c2_i32 : i32 to vector<64x64xi32>
    %39 = arith.addi %2, %38 : vector<64x64xi32>
    %40 = arith.cmpi eq, %1, %39 : vector<64x64xi32>
    %41 = arith.extui %40 : vector<64x64xi1> to vector<64x64xi32>
    %42 = arith.sitofp %41 : vector<64x64xi32> to vector<64x64xf32>
    %cst_17 = arith.constant dense<0.000000e+00> : vector<64x64xf32>
    %43 = tpu.matmul %0, %42, %cst_17 {dimension_numbers = #tpu.dot_dimension_numbers<[1], [0], [0], [1], [0, 0, 1, 1], [], []>} : vector<64x64xf32>, vector<64x64xf32>, vector<64x64xf32> -> vector<64x64xf32>
    %c4 = arith.constant 4 : index
    %c0_18 = arith.constant 0 : index
    %c0_19 = arith.constant 0 : index
    %44 = vector.load %arg1[%c4, %c0_18, %c0_19] : memref<5x128x64xf32, #tpu.memory_space<vmem>>, vector<1x128x64xf32>
    %45 = vector.shape_cast %44 : vector<1x128x64xf32> to vector<128x64xf32>
    %cst_20 = arith.constant dense<0.000000e+00> : vector<128x64xf32>
    %46 = tpu.matmul %45, %43, %cst_20 {dimension_numbers = #tpu.dot_dimension_numbers<[1], [0], [0], [1], [0, 0, 1, 1], [], []>} : vector<128x64xf32>, vector<64x64xf32>, vector<128x64xf32> -> vector<128x64xf32>
    %47 = arith.addf %37, %46 : vector<128x64xf32>
    %48 = tpu.iota {dimensions = array<i32: 0>} : vector<128x64xi32>
    %c64_i32 = arith.constant 64 : i32
    %49 = vector.broadcast %c64_i32 : i32 to vector<128x64xi32>
    %50 = arith.cmpi slt, %48, %49 : vector<128x64xi32>
    %c0_21 = arith.constant 0 : index
    %51 = memref.load %arg2[%c0_21] : memref<2xf32, #tpu.memory_space<smem>>
    %c1_22 = arith.constant 1 : index
    %52 = memref.load %arg2[%c1_22] : memref<2xf32, #tpu.memory_space<smem>>
    %53 = vector.broadcast %51 : f32 to vector<128x64xf32>
    %54 = vector.broadcast %52 : f32 to vector<128x64xf32>
    %55 = arith.select %50, %53, %54 : vector<128x64xi1>, vector<128x64xf32>
    %56 = arith.addf %47, %55 : vector<128x64xf32>
    %cst_23 = arith.constant 5.000000e+00 : f32
    %57 = vector.broadcast %cst_23 : f32 to vector<128x64xf32>
    %58 = arith.mulf %57, %56 : vector<128x64xf32>
    %cst_24 = arith.constant 0.000000e+00 : f32
    %59 = vector.broadcast %cst_24 : f32 to vector<128x64xf32>
    %60 = arith.maximumf %58, %59 : vector<128x64xf32>
    %61 = vector.extract_strided_slice %60 {offsets = [0, 0], sizes = [64, 64], strides = [1, 1]} : vector<128x64xf32> to vector<64x64xf32>
    %c0_25 = arith.constant 0 : index
    %c0_26 = arith.constant 0 : index
    %c0_27 = arith.constant 0 : index
    %62 = vector.load %arg3[%c0_25, %c0_26, %c0_27] : memref<2x64x64xf32, #tpu.memory_space<vmem>>, vector<1x64x64xf32>
    %63 = vector.shape_cast %62 : vector<1x64x64xf32> to vector<64x64xf32>
    %64 = vector.shape_cast %61 : vector<64x64xf32> to vector<1x64x64xf32>
    tpu.vector_store %arg3[%c0_25, %c0_26, %c0_27], %64 {strides = array<i32>} : memref<2x64x64xf32, #tpu.memory_space<vmem>>, vector<1x64x64xf32>,
    %65 = vector.extract_strided_slice %60 {offsets = [64, 0], sizes = [64, 64], strides = [1, 1]} : vector<128x64xf32> to vector<64x64xf32>
    %c1_28 = arith.constant 1 : index
    %c0_29 = arith.constant 0 : index
    %c0_30 = arith.constant 0 : index
    %66 = vector.load %arg3[%c1_28, %c0_29, %c0_30] : memref<2x64x64xf32, #tpu.memory_space<vmem>>, vector<1x64x64xf32>
    %67 = vector.shape_cast %66 : vector<1x64x64xf32> to vector<64x64xf32>
    %68 = vector.shape_cast %65 : vector<64x64xf32> to vector<1x64x64xf32>
    tpu.vector_store %arg3[%c1_28, %c0_29, %c0_30], %68 {strides = array<i32>} : memref<2x64x64xf32, #tpu.memory_space<vmem>>, vector<1x64x64xf32>,
    return
  }
}

</mosaic_0001>

<llo_original>
// kernel: model_forward.1
$region0: #{model_forward.1}
  #allocation0 [shape = 'u32[]', space=smem, size = 0x4, offset = 0x4, fixed_abs, tag = 'smem constant byte address 0x4 - core index']
  #allocation1 [shape = 'u32[144,128]{1,0:T(1,128)}', space=vmem, size = 0x12000, scoped, tag = 'internal scratch']
  %s0 = inlined_call_operand.vmem [shape: f32[64,64], index: 0, kind: input, shape index: {}]
  %s1 = inlined_call_operand.vmem [shape: f32[5,128,64], index: 1, kind: input, shape index: {}]
  %s2 = inlined_call_operand.vmem [shape: f32[2], index: 2, kind: input, shape index: {}]
  %s3 = inlined_call_operand.hbm [shape: f32[2,64,64], index: 3, kind: output, shape index: {}]
  %s4 = sld [smem:[#allocation0]]
  $region26: #{model_forward.1} parent=0
    _
  %s6 = ssub.s32 1, %s4
  %s7 = scalar_select 0, %s6, %s4
  $region1: #{model_forward.1} parent=0
    #allocation2 [shape = 'u8[512]{0}', space=smem, size = 0x200, scoped, tag = 'input window, operand 2, single buffered']
    #allocation3 [shape = 's32[1]{0}', space=sflag, size = 0x4, scoped, tag = 'scoped memory for model_forward.1']
    #allocation4 [shape = 's32[1]{0}', space=sflag, size = 0x4, scoped, tag = 'scoped memory for model_forward.1']
    #allocation5 [shape = 'u8[65536]{0}', space=vmem, size = 0x10000, scoped, tag = 'output window, operand 0, single buffered']
    %8 = vsyncpa [#allocation4], 0
    %9 = vsyncpa [#allocation3], 0
    // Predicated region
    $region2: #{model_forward.1} parent=1 // pred_check
      _
    $region3: #{model_forward.1} parent=1 // pred_check_branch
      %11 = sbr.rel (0) target = $region5
    $region4: #{model_forward.1} parent=1 // pred_region
      _
    $region5: #{model_forward.1} parent=1 // pred_fallthru
      _
    // Predicated region
    $region6: #{model_forward.1} parent=1 // pred_check
      _
    $region7: #{model_forward.1} parent=1 // pred_check_branch
      %13 = sbr.rel (0) target = $region9
    $region8: #{model_forward.1} parent=1 // pred_region
      _
    $region9: #{model_forward.1} parent=1 // pred_fallthru
      _
    // Predicated region
    $region10: #{model_forward.1} parent=1 // pred_check
      _
    $region11: #{model_forward.1} parent=1 // pred_check_branch
      %15 = sbr.rel (0) target = $region13
    $region12: #{model_forward.1} parent=1 // pred_region
      %s17 = ssub.s32 16, 16
      %18 = vsyncadd [#allocation4], %s17
      %s20 = sshll.u32 %s2, 4
      %s21 = int_to_ptr.vmem [resolvable:$true] %s20
      %23 = dma.vmem_to_smem %s21, 16, [#allocation2], [#allocation4]
    $region13: #{model_forward.1} parent=1 // pred_fallthru
      _
    // Predicated region
    $region14: #{model_forward.1} parent=1 // pred_check
      _
    $region15: #{model_forward.1} parent=1 // pred_check_branch
      %25 = sbr.rel (0) target = $region17
    $region16: #{model_forward.1} parent=1 // pred_region
      %26 = dma.done [#allocation4], 16
    $region17: #{model_forward.1} parent=1 // pred_fallthru
      _
    %27 = sfence
    %v28 = vld [vmem:[%s0] sm:$0xff]
    %v29 = vld [vmem:[%s0 + $0x8] sm:$0xff]
    %v30 = vld [vmem:[%s0 + $0x10] sm:$0xff]
    %v31 = vld [vmem:[%s0 + $0x18] sm:$0xff]
    %v32 = vld [vmem:[%s0 + $0x20] sm:$0xff]
    %v33 = vld [vmem:[%s0 + $0x28] sm:$0xff]
    %v34 = vld [vmem:[%s0 + $0x30] sm:$0xff]
    %v35 = vld [vmem:[%s0 + $0x38] sm:$0xff]
    %v36 = vlaneseq
    %v37 = vshrl.u32 %v36, 7
    %v38 = vadd.s32 %v37, 8
    %v39 = vadd.s32 %v37, 16
    %v40 = vadd.s32 %v37, 24
    %v41 = vadd.s32 %v37, 32
    %v42 = vadd.s32 %v37, 40
    %v43 = vadd.s32 %v37, 48
    %v44 = vadd.s32 %v37, 56
    %v45 = vlaneseq
    %v46 = vand.u32 %v45, 127
    %v47 = vadd.s32 %v46, 4294967294
    %vm48 = vcmp.eq.s32.totalorder %v37, %v47
    %vm49 = vcmp.eq.s32.totalorder %v38, %v47
    %vm50 = vcmp.eq.s32.totalorder %v39, %v47
    %vm51 = vcmp.eq.s32.totalorder %v40, %v47
    %vm52 = vcmp.eq.s32.totalorder %v41, %v47
    %vm53 = vcmp.eq.s32.totalorder %v42, %v47
    %vm54 = vcmp.eq.s32.totalorder %v43, %v47
    %vm55 = vcmp.eq.s32.totalorder %v44, %v47
    %v56 = vsel %vm48, 1, 0
    %v57 = vsel %vm49, 1, 0
    %v58 = vsel %vm50, 1, 0
    %v59 = vsel %vm51, 1, 0
    %v60 = vsel %vm52, 1, 0
    %v61 = vsel %vm53, 1, 0
    %v62 = vsel %vm54, 1, 0
    %v63 = vsel %vm55, 1, 0
    %v64 = vcvt.s32.f32 %v56
    %v65 = vcvt.s32.f32 %v57
    %v66 = vcvt.s32.f32 %v58
    %v67 = vcvt.s32.f32 %v59
    %v68 = vcvt.s32.f32 %v60
    %v69 = vcvt.s32.f32 %v61
    %v70 = vcvt.s32.f32 %v62
    %v71 = vcvt.s32.f32 %v63
    %vm72 = vcmask 523264
    %v74 = vsel %vm72, %v28, 0
    %v77 = vsel %vm72, %v29, 0
    %v80 = vsel %vm72, %v30, 0
    %v83 = vsel %vm72, %v31, 0
    %v86 = vsel %vm72, %v32, 0
    %v89 = vsel %vm72, %v33, 0
    %v92 = vsel %vm72, %v34, 0
    %v95 = vsel %vm72, %v35, 0
    %97 = vmatprep.subr.mxu0 0.0
    %98 = vmatpush1.msra.mxu0 0.0
    %99 = vmatprep.subr.mxu0 0.0
    %100 = vmatpush1.msra.mxu0 0.0
    %101 = vmatprep.subr.mxu0 0.0
    %102 = vmatpush1.msra.mxu0 0.0
    %103 = vmatprep.subr.mxu0 0.0
    %104 = vmatpush1.msra.mxu0 0.0
    %105 = vmatprep.subr.mxu0 0.0
    %106 = vmatpush1.msra.mxu0 0.0
    %107 = vmatprep.subr.mxu0 0.0
    %108 = vmatpush1.msra.mxu0 0.0
    %109 = vmatprep.subr.mxu0 0.0
    %110 = vmatpush1.msra.mxu0 0.0
    %111 = vmatprep.subr.mxu0 0.0
    %112 = vmatpush1.msra.mxu0 0.0
    %113 = vmatprep.subr.mxu0 0.0
    %114 = vmatpush1.msra.mxu0 %v71
    %115 = vmatprep.subr.mxu0 0.0
    %116 = vmatpush1.msra.mxu0 %v70
    %117 = vmatprep.subr.mxu0 0.0
    %118 = vmatpush1.msra.mxu0 %v69
    %119 = vmatprep.subr.mxu0 0.0
    %120 = vmatpush1.msra.mxu0 %v68
    %121 = vmatprep.subr.mxu0 0.0
    %122 = vmatpush1.msra.mxu0 %v67
    %123 = vmatprep.subr.mxu0 0.0
    %124 = vmatpush1.msra.mxu0 %v66
    %125 = vmatprep.subr.mxu0 0.0
    %126 = vmatpush1.msra.mxu0 %v65
    %127 = vmatprep.subr.mxu0 0.0
    %128 = vmatpush1.msra.mxu0 %v64
    %129 = vmatprep.subr.mxu0 0.0
    %130 = vmatpush2.msra.mxu0 0.0
    %131 = vmatprep.subr.mxu0 0.0
    %132 = vmatpush2.msra.mxu0 0.0
    %133 = vmatprep.subr.mxu0 0.0
    %134 = vmatpush2.msra.mxu0 0.0
    %135 = vmatprep.subr.mxu0 0.0
    %136 = vmatpush2.msra.mxu0 0.0
    %137 = vmatprep.subr.mxu0 0.0
    %138 = vmatpush2.msra.mxu0 0.0
    %139 = vmatprep.subr.mxu0 0.0
    %140 = vmatpush2.msra.mxu0 0.0
    %141 = vmatprep.subr.mxu0 0.0
    %142 = vmatpush2.msra.mxu0 0.0
    %143 = vmatprep.subr.mxu0 0.0
    %144 = vmatpush2.msra.mxu0 0.0
    %145 = vmatprep.subr.mxu0 0.0
    %146 = vmatpush2.msra.mxu0 0.0
    %147 = vmatprep.subr.mxu0 0.0
    %148 = vmatpush2.msra.mxu0 0.0
    %149 = vmatprep.subr.mxu0 0.0
    %150 = vmatpush2.msra.mxu0 0.0
    %151 = vmatprep.subr.mxu0 0.0
    %152 = vmatpush2.msra.mxu0 0.0
    %153 = vmatprep.subr.mxu0 0.0
    %154 = vmatpush2.msra.mxu0 0.0
    %155 = vmatprep.subr.mxu0 0.0
    %156 = vmatpush2.msra.mxu0 0.0
    %157 = vmatprep.subr.mxu0 0.0
    %158 = vmatpush2.msra.mxu0 0.0
    %159 = vmatprep.subr.mxu0 0.0
    %160 = vmatpush2.msra.mxu0 0.0
    %161 = vmatprep.mubr.f32.mxu0 0.0
    %162 = vmatmul.mubr.f32.gmra.mxu0 %v74
    %v163 = vpop.f32.mrf.mxu0
    %v164 = vadd.f32 0.0, %v163
    %v165 = vpop.f32.mrf.mxu0
    %166 = vmatprep.mubr.f32.mxu0 0.0
    %167 = vmatmul.mubr.f32.gmra.mxu0 %v77
    %v168 = vpop.f32.mrf.mxu0
    %v169 = vadd.f32 0.0, %v168
    %v170 = vpop.f32.mrf.mxu0
    %171 = vmatprep.mubr.f32.mxu0 0.0
    %172 = vmatmul.mubr.f32.gmra.mxu0 %v80
    %v173 = vpop.f32.mrf.mxu0
    %v174 = vadd.f32 0.0, %v173
    %v175 = vpop.f32.mrf.mxu0
    %176 = vmatprep.mubr.f32.mxu0 0.0
    %177 = vmatmul.mubr.f32.gmra.mxu0 %v83
    %v178 = vpop.f32.mrf.mxu0
    %v179 = vadd.f32 0.0, %v178
    %v180 = vpop.f32.mrf.mxu0
    %181 = vmatprep.mubr.f32.mxu0 0.0
    %182 = vmatmul.mubr.f32.gmra.mxu0 %v86
    %v183 = vpop.f32.mrf.mxu0
    %v184 = vadd.f32 0.0, %v183
    %v185 = vpop.f32.mrf.mxu0
    %186 = vmatprep.mubr.f32.mxu0 0.0
    %187 = vmatmul.mubr.f32.gmra.mxu0 %v89
    %v188 = vpop.f32.mrf.mxu0
    %v189 = vadd.f32 0.0, %v188
    %v190 = vpop.f32.mrf.mxu0
    %191 = vmatprep.mubr.f32.mxu0 0.0
    %192 = vmatmul.mubr.f32.gmra.mxu0 %v92
    %v193 = vpop.f32.mrf.mxu0
    %v194 = vadd.f32 0.0, %v193
    %v195 = vpop.f32.mrf.mxu0
    %196 = vmatprep.mubr.f32.mxu0 0.0
    %197 = vmatmul.mubr.f32.gmra.mxu0 %v95
    %v198 = vpop.f32.mrf.mxu0
    %v199 = vadd.f32 0.0, %v198
    %v200 = vpop.f32.mrf.mxu0
    %201 = vdwg.mxu0
    %v202 = vld [vmem:[%s1] sm:$0xff]
    %v203 = vld [vmem:[%s1 + $0x8] sm:$0xff]
    %v204 = vld [vmem:[%s1 + $0x10] sm:$0xff]
    %v205 = vld [vmem:[%s1 + $0x18] sm:$0xff]
    %v206 = vld [vmem:[%s1 + $0x20] sm:$0xff]
    %v207 = vld [vmem:[%s1 + $0x28] sm:$0xff]
    %v208 = vld [vmem:[%s1 + $0x30] sm:$0xff]
    %v209 = vld [vmem:[%s1 + $0x38] sm:$0xff]
    %v210 = vld [vmem:[%s1 + $0x40] sm:$0xff]
    %v211 = vld [vmem:[%s1 + $0x48] sm:$0xff]
    %v212 = vld [vmem:[%s1 + $0x50] sm:$0xff]
    %v213 = vld [vmem:[%s1 + $0x58] sm:$0xff]
    %v214 = vld [vmem:[%s1 + $0x60] sm:$0xff]
    %v215 = vld [vmem:[%s1 + $0x68] sm:$0xff]
    %v216 = vld [vmem:[%s1 + $0x70] sm:$0xff]
    %v217 = vld [vmem:[%s1 + $0x78] sm:$0xff]
    %v218 = vadd.s32 %v46, 4294967295
    %vm219 = vcmp.eq.s32.totalorder %v37, %v218
    %vm220 = vcmp.eq.s32.totalorder %v38, %v218
    %vm221 = vcmp.eq.s32.totalorder %v39, %v218
    %vm222 = vcmp.eq.s32.totalorder %v40, %v218
    %vm223 = vcmp.eq.s32.totalorder %v41, %v218
    %vm224 = vcmp.eq.s32.totalorder %v42, %v218
    %vm225 = vcmp.eq.s32.totalorder %v43, %v218
    %vm226 = vcmp.eq.s32.totalorder %v44, %v218
    %v227 = vsel %vm219, 1, 0
    %v228 = vsel %vm220, 1, 0
    %v229 = vsel %vm221, 1, 0
    %v230 = vsel %vm222, 1, 0
    %v231 = vsel %vm223, 1, 0
    %v232 = vsel %vm224, 1, 0
    %v233 = vsel %vm225, 1, 0
    %v234 = vsel %vm226, 1, 0
    %v235 = vcvt.s32.f32 %v227
    %v236 = vcvt.s32.f32 %v228
    %v237 = vcvt.s32.f32 %v229
    %v238 = vcvt.s32.f32 %v230
    %v239 = vcvt.s32.f32 %v231
    %v240 = vcvt.s32.f32 %v232
    %v241 = vcvt.s32.f32 %v233
    %v242 = vcvt.s32.f32 %v234
    %243 = vmatprep.subr.mxu0 0.0
    %244 = vmatpush1.msra.mxu0 0.0
    %245 = vmatprep.subr.mxu0 0.0
    %246 = vmatpush1.msra.mxu0 0.0
    %247 = vmatprep.subr.mxu0 0.0
    %248 = vmatpush1.msra.mxu0 0.0
    %249 = vmatprep.subr.mxu0 0.0
    %250 = vmatpush1.msra.mxu0 0.0
    %251 = vmatprep.subr.mxu0 0.0
    %252 = vmatpush1.msra.mxu0 0.0
    %253 = vmatprep.subr.mxu0 0.0
    %254 = vmatpush1.msra.mxu0 0.0
    %255 = vmatprep.subr.mxu0 0.0
    %256 = vmatpush1.msra.mxu0 0.0
    %257 = vmatprep.subr.mxu0 0.0
    %258 = vmatpush1.msra.mxu0 0.0
    %259 = vmatprep.subr.mxu0 0.0
    %260 = vmatpush1.msra.mxu0 %v242
    %261 = vmatprep.subr.mxu0 0.0
    %262 = vmatpush1.msra.mxu0 %v241
    %263 = vmatprep.subr.mxu0 0.0
    %264 = vmatpush1.msra.mxu0 %v240
    %265 = vmatprep.subr.mxu0 0.0
    %266 = vmatpush1.msra.mxu0 %v239
    %267 = vmatprep.subr.mxu0 0.0
    %268 = vmatpush1.msra.mxu0 %v238
    %269 = vmatprep.subr.mxu0 0.0
    %270 = vmatpush1.msra.mxu0 %v237
    %271 = vmatprep.subr.mxu0 0.0
    %272 = vmatpush1.msra.mxu0 %v236
    %273 = vmatprep.subr.mxu0 0.0
    %274 = vmatpush1.msra.mxu0 %v235
    %275 = vmatprep.subr.mxu0 0.0
    %276 = vmatpush2.msra.mxu0 0.0
    %277 = vmatprep.subr.mxu0 0.0
    %278 = vmatpush2.msra.mxu0 0.0
    %279 = vmatprep.subr.mxu0 0.0
    %280 = vmatpush2.msra.mxu0 0.0
    %281 = vmatprep.subr.mxu0 0.0
    %282 = vmatpush2.msra.mxu0 0.0
    %283 = vmatprep.subr.mxu0 0.0
    %284 = vmatpush2.msra.mxu0 0.0
    %285 = vmatprep.subr.mxu0 0.0
    %286 = vmatpush2.msra.mxu0 0.0
    %287 = vmatprep.subr.mxu0 0.0
    %288 = vmatpush2.msra.mxu0 0.0
    %289 = vmatprep.subr.mxu0 0.0
    %290 = vmatpush2.msra.mxu0 0.0
    %291 = vmatprep.subr.mxu0 0.0
    %292 = vmatpush2.msra.mxu0 0.0
    %293 = vmatprep.subr.mxu0 0.0
    %294 = vmatpush2.msra.mxu0 0.0
    %295 = vmatprep.subr.mxu0 0.0
    %296 = vmatpush2.msra.mxu0 0.0
    %297 = vmatprep.subr.mxu0 0.0
    %298 = vmatpush2.msra.mxu0 0.0
    %299 = vmatprep.subr.mxu0 0.0
    %300 = vmatpush2.msra.mxu0 0.0
    %301 = vmatprep.subr.mxu0 0.0
    %302 = vmatpush2.msra.mxu0 0.0
    %303 = vmatprep.subr.mxu0 0.0
    %304 = vmatpush2.msra.mxu0 0.0
    %305 = vmatprep.subr.mxu0 0.0
    %306 = vmatpush2.msra.mxu0 0.0
    %307 = vmatprep.mubr.f32.mxu0 0.0
    %308 = vmatmul.mubr.f32.gmra.mxu0 %v74
    %v309 = vpop.f32.mrf.mxu0
    %v310 = vadd.f32 0.0, %v309
    %v311 = vpop.f32.mrf.mxu0
    %312 = vmatprep.mubr.f32.mxu0 0.0
    %313 = vmatmul.mubr.f32.gmra.mxu0 %v77
    %v314 = vpop.f32.mrf.mxu0
    %v315 = vadd.f32 0.0, %v314
    %v316 = vpop.f32.mrf.mxu0
    %317 = vmatprep.mubr.f32.mxu0 0.0
    %318 = vmatmul.mubr.f32.gmra.mxu0 %v80
    %v319 = vpop.f32.mrf.mxu0
    %v320 = vadd.f32 0.0, %v319
    %v321 = vpop.f32.mrf.mxu0
    %322 = vmatprep.mubr.f32.mxu0 0.0
    %323 = vmatmul.mubr.f32.gmra.mxu0 %v83
    %v324 = vpop.f32.mrf.mxu0
    %v325 = vadd.f32 0.0, %v324
    %v326 = vpop.f32.mrf.mxu0
    %327 = vmatprep.mubr.f32.mxu0 0.0
    %328 = vmatmul.mubr.f32.gmra.mxu0 %v86
    %v329 = vpop.f32.mrf.mxu0
    %v330 = vadd.f32 0.0, %v329
    %v331 = vpop.f32.mrf.mxu0
    %332 = vmatprep.mubr.f32.mxu0 0.0
    %333 = vmatmul.mubr.f32.gmra.mxu0 %v89
    %v334 = vpop.f32.mrf.mxu0
    %v335 = vadd.f32 0.0, %v334
    %v336 = vpop.f32.mrf.mxu0
    %337 = vmatprep.mubr.f32.mxu0 0.0
    %338 = vmatmul.mubr.f32.gmra.mxu0 %v92
    %v339 = vpop.f32.mrf.mxu0
    %v340 = vadd.f32 0.0, %v339
    %v341 = vpop.f32.mrf.mxu0
    %342 = vmatprep.mubr.f32.mxu0 0.0
    %343 = vmatmul.mubr.f32.gmra.mxu0 %v95
    %v344 = vpop.f32.mrf.mxu0
    %v345 = vadd.f32 0.0, %v344
    %v346 = vpop.f32.mrf.mxu0
    %347 = vdwg.mxu0
    %s348 = scalar_lea.vmem %s1, 128
    %v349 = vld [vmem:[%s348] sm:$0xff]
    %v350 = vld [vmem:[%s348 + $0x8] sm:$0xff]
    %v351 = vld [vmem:[%s348 + $0x10] sm:$0xff]
    %v352 = vld [vmem:[%s348 + $0x18] sm:$0xff]
    %v353 = vld [vmem:[%s348 + $0x20] sm:$0xff]
    %v354 = vld [vmem:[%s348 + $0x28] sm:$0xff]
    %v355 = vld [vmem:[%s348 + $0x30] sm:$0xff]
    %v356 = vld [vmem:[%s348 + $0x38] sm:$0xff]
    %v357 = vld [vmem:[%s348 + $0x40] sm:$0xff]
    %v358 = vld [vmem:[%s348 + $0x48] sm:$0xff]
    %v359 = vld [vmem:[%s348 + $0x50] sm:$0xff]
    %v360 = vld [vmem:[%s348 + $0x58] sm:$0xff]
    %v361 = vld [vmem:[%s348 + $0x60] sm:$0xff]
    %v362 = vld [vmem:[%s348 + $0x68] sm:$0xff]
    %v363 = vld [vmem:[%s348 + $0x70] sm:$0xff]
    %v364 = vld [vmem:[%s348 + $0x78] sm:$0xff]
    %v366 = vsel %vm72, %v349, 0
    %v369 = vsel %vm72, %v350, 0
    %v372 = vsel %vm72, %v351, 0
    %v375 = vsel %vm72, %v352, 0
    %v378 = vsel %vm72, %v353, 0
    %v381 = vsel %vm72, %v354, 0
    %v384 = vsel %vm72, %v355, 0
    %v387 = vsel %vm72, %v356, 0
    %v390 = vsel %vm72, %v357, 0
    %v393 = vsel %vm72, %v358, 0
    %v396 = vsel %vm72, %v359, 0
    %v399 = vsel %vm72, %v360, 0
    %v402 = vsel %vm72, %v361, 0
    %v405 = vsel %vm72, %v362, 0
    %v408 = vsel %vm72, %v363, 0
    %v411 = vsel %vm72, %v364, 0
    %413 = vmatprep.subr.mxu0 0.0
    %414 = vmatpush1.msra.mxu0 0.0
    %415 = vmatprep.subr.mxu0 0.0
    %416 = vmatpush1.msra.mxu0 0.0
    %417 = vmatprep.subr.mxu0 0.0
    %418 = vmatpush1.msra.mxu0 0.0
    %419 = vmatprep.subr.mxu0 0.0
    %420 = vmatpush1.msra.mxu0 0.0
    %421 = vmatprep.subr.mxu0 0.0
    %422 = vmatpush1.msra.mxu0 0.0
    %423 = vmatprep.subr.mxu0 0.0
    %424 = vmatpush1.msra.mxu0 0.0
    %425 = vmatprep.subr.mxu0 0.0
    %426 = vmatpush1.msra.mxu0 0.0
    %427 = vmatprep.subr.mxu0 0.0
    %428 = vmatpush1.msra.mxu0 0.0
    %429 = vmatprep.subr.mxu0 0.0
    %430 = vmatpush1.msra.mxu0 %v345
    %431 = vmatprep.subr.mxu0 0.0
    %432 = vmatpush1.msra.mxu0 %v340
    %433 = vmatprep.subr.mxu0 0.0
    %434 = vmatpush1.msra.mxu0 %v335
    %435 = vmatprep.subr.mxu0 0.0
    %436 = vmatpush1.msra.mxu0 %v330
    %437 = vmatprep.subr.mxu0 0.0
    %438 = vmatpush1.msra.mxu0 %v325
    %439 = vmatprep.subr.mxu0 0.0
    %440 = vmatpush1.msra.mxu0 %v320
    %441 = vmatprep.subr.mxu0 0.0
    %442 = vmatpush1.msra.mxu0 %v315
    %443 = vmatprep.subr.mxu0 0.0
    %444 = vmatpush1.msra.mxu0 %v310
    %445 = vmatprep.subr.mxu0 0.0
    %446 = vmatpush2.msra.mxu0 0.0
    %447 = vmatprep.subr.mxu0 0.0
    %448 = vmatpush2.msra.mxu0 0.0
    %449 = vmatprep.subr.mxu0 0.0
    %450 = vmatpush2.msra.mxu0 0.0
    %451 = vmatprep.subr.mxu0 0.0
    %452 = vmatpush2.msra.mxu0 0.0
    %453 = vmatprep.subr.mxu0 0.0
    %454 = vmatpush2.msra.mxu0 0.0
    %455 = vmatprep.subr.mxu0 0.0
    %456 = vmatpush2.msra.mxu0 0.0
    %457 = vmatprep.subr.mxu0 0.0
    %458 = vmatpush2.msra.mxu0 0.0
    %459 = vmatprep.subr.mxu0 0.0
    %460 = vmatpush2.msra.mxu0 0.0
    %461 = vmatprep.subr.mxu0 0.0
    %462 = vmatpush2.msra.mxu0 0.0
    %463 = vmatprep.subr.mxu0 0.0
    %464 = vmatpush2.msra.mxu0 0.0
    %465 = vmatprep.subr.mxu0 0.0
    %466 = vmatpush2.msra.mxu0 0.0
    %467 = vmatprep.subr.mxu0 0.0
    %468 = vmatpush2.msra.mxu0 0.0
    %469 = vmatprep.subr.mxu0 0.0
    %470 = vmatpush2.msra.mxu0 0.0
    %471 = vmatprep.subr.mxu0 0.0
    %472 = vmatpush2.msra.mxu0 0.0
    %473 = vmatprep.subr.mxu0 0.0
    %474 = vmatpush2.msra.mxu0 0.0
    %475 = vmatprep.subr.mxu0 0.0
    %476 = vmatpush2.msra.mxu0 0.0
    %477 = vmatprep.mubr.f32.mxu0 0.0
    %478 = vmatmul.mubr.f32.gmra.mxu0 %v366
    %v479 = vpop.f32.mrf.mxu0
    %v480 = vadd.f32 0.0, %v479
    %v481 = vpop.f32.mrf.mxu0
    %482 = vmatprep.mubr.f32.mxu0 0.0
    %483 = vmatmul.mubr.f32.gmra.mxu0 %v369
    %v484 = vpop.f32.mrf.mxu0
    %v485 = vadd.f32 0.0, %v484
    %v486 = vpop.f32.mrf.mxu0
    %487 = vmatprep.mubr.f32.mxu0 0.0
    %488 = vmatmul.mubr.f32.gmra.mxu0 %v372
    %v489 = vpop.f32.mrf.mxu0
    %v490 = vadd.f32 0.0, %v489
    %v491 = vpop.f32.mrf.mxu0
    %492 = vmatprep.mubr.f32.mxu0 0.0
    %493 = vmatmul.mubr.f32.gmra.mxu0 %v375
    %v494 = vpop.f32.mrf.mxu0
    %v495 = vadd.f32 0.0, %v494
    %v496 = vpop.f32.mrf.mxu0
    %497 = vmatprep.mubr.f32.mxu0 0.0
    %498 = vmatmul.mubr.f32.gmra.mxu0 %v378
    %v499 = vpop.f32.mrf.mxu0
    %v500 = vadd.f32 0.0, %v499
    %v501 = vpop.f32.mrf.mxu0
    %502 = vmatprep.mubr.f32.mxu0 0.0
    %503 = vmatmul.mubr.f32.gmra.mxu0 %v381
    %v504 = vpop.f32.mrf.mxu0
    %v505 = vadd.f32 0.0, %v504
    %v506 = vpop.f32.mrf.mxu0
    %507 = vmatprep.mubr.f32.mxu0 0.0
    %508 = vmatmul.mubr.f32.gmra.mxu0 %v384
    %v509 = vpop.f32.mrf.mxu0
    %v510 = vadd.f32 0.0, %v509
    %v511 = vpop.f32.mrf.mxu0
    %512 = vmatprep.mubr.f32.mxu0 0.0
    %513 = vmatmul.mubr.f32.gmra.mxu0 %v387
    %v514 = vpop.f32.mrf.mxu0
    %v515 = vadd.f32 0.0, %v514
    %v516 = vpop.f32.mrf.mxu0
    %517 = vmatprep.mubr.f32.mxu0 0.0
    %518 = vmatmul.mubr.f32.gmra.mxu0 %v390
    %v519 = vpop.f32.mrf.mxu0
    %v520 = vadd.f32 0.0, %v519
    %v521 = vpop.f32.mrf.mxu0
    %522 = vmatprep.mubr.f32.mxu0 0.0
    %523 = vmatmul.mubr.f32.gmra.mxu0 %v393
    %v524 = vpop.f32.mrf.mxu0
    %v525 = vadd.f32 0.0, %v524
    %v526 = vpop.f32.mrf.mxu0
    %527 = vmatprep.mubr.f32.mxu0 0.0
    %528 = vmatmul.mubr.f32.gmra.mxu0 %v396
    %v529 = vpop.f32.mrf.mxu0
    %v530 = vadd.f32 0.0, %v529
    %v531 = vpop.f32.mrf.mxu0
    %532 = vmatprep.mubr.f32.mxu0 0.0
    %533 = vmatmul.mubr.f32.gmra.mxu0 %v399
    %v534 = vpop.f32.mrf.mxu0
    %v535 = vadd.f32 0.0, %v534
    %v536 = vpop.f32.mrf.mxu0
    %537 = vmatprep.mubr.f32.mxu0 0.0
    %538 = vmatmul.mubr.f32.gmra.mxu0 %v402
    %v539 = vpop.f32.mrf.mxu0
    %v540 = vadd.f32 0.0, %v539
    %v541 = vpop.f32.mrf.mxu0
    %542 = vmatprep.mubr.f32.mxu0 0.0
    %543 = vmatmul.mubr.f32.gmra.mxu0 %v405
    %v544 = vpop.f32.mrf.mxu0
    %v545 = vadd.f32 0.0, %v544
    %v546 = vpop.f32.mrf.mxu0
    %547 = vmatprep.mubr.f32.mxu0 0.0
    %548 = vmatmul.mubr.f32.gmra.mxu0 %v408
    %v549 = vpop.f32.mrf.mxu0
    %v550 = vadd.f32 0.0, %v549
    %v551 = vpop.f32.mrf.mxu0
    %552 = vmatprep.mubr.f32.mxu0 0.0
    %553 = vmatmul.mubr.f32.gmra.mxu0 %v411
    %v554 = vpop.f32.mrf.mxu0
    %v555 = vadd.f32 0.0, %v554
    %v556 = vpop.f32.mrf.mxu0
    %557 = vdwg.mxu0
    %v559 = vsel %vm72, %v202, 0
    %v562 = vsel %vm72, %v203, 0
    %v565 = vsel %vm72, %v204, 0
    %v568 = vsel %vm72, %v205, 0
    %v571 = vsel %vm72, %v206, 0
    %v574 = vsel %vm72, %v207, 0
    %v577 = vsel %vm72, %v208, 0
    %v580 = vsel %vm72, %v209, 0
    %v583 = vsel %vm72, %v210, 0
    %v586 = vsel %vm72, %v211, 0
    %v589 = vsel %vm72, %v212, 0
    %v592 = vsel %vm72, %v213, 0
    %v595 = vsel %vm72, %v214, 0
    %v598 = vsel %vm72, %v215, 0
    %v601 = vsel %vm72, %v216, 0
    %v604 = vsel %vm72, %v217, 0
    %606 = vmatprep.subr.mxu0 0.0
    %607 = vmatpush1.msra.mxu0 0.0
    %608 = vmatprep.subr.mxu0 0.0
    %609 = vmatpush1.msra.mxu0 0.0
    %610 = vmatprep.subr.mxu0 0.0
    %611 = vmatpush1.msra.mxu0 0.0
    %612 = vmatprep.subr.mxu0 0.0
    %613 = vmatpush1.msra.mxu0 0.0
    %614 = vmatprep.subr.mxu0 0.0
    %615 = vmatpush1.msra.mxu0 0.0
    %616 = vmatprep.subr.mxu0 0.0
    %617 = vmatpush1.msra.mxu0 0.0
    %618 = vmatprep.subr.mxu0 0.0
    %619 = vmatpush1.msra.mxu0 0.0
    %620 = vmatprep.subr.mxu0 0.0
    %621 = vmatpush1.msra.mxu0 0.0
    %622 = vmatprep.subr.mxu0 0.0
    %623 = vmatpush1.msra.mxu0 %v199
    %624 = vmatprep.subr.mxu0 0.0
    %625 = vmatpush1.msra.mxu0 %v194
    %626 = vmatprep.subr.mxu0 0.0
    %627 = vmatpush1.msra.mxu0 %v189
    %628 = vmatprep.subr.mxu0 0.0
    %629 = vmatpush1.msra.mxu0 %v184
    %630 = vmatprep.subr.mxu0 0.0
    %631 = vmatpush1.msra.mxu0 %v179
    %632 = vmatprep.subr.mxu0 0.0
    %633 = vmatpush1.msra.mxu0 %v174
    %634 = vmatprep.subr.mxu0 0.0
    %635 = vmatpush1.msra.mxu0 %v169
    %636 = vmatprep.subr.mxu0 0.0
    %637 = vmatpush1.msra.mxu0 %v164
    %638 = vmatprep.subr.mxu0 0.0
    %639 = vmatpush2.msra.mxu0 0.0
    %640 = vmatprep.subr.mxu0 0.0
    %641 = vmatpush2.msra.mxu0 0.0
    %642 = vmatprep.subr.mxu0 0.0
    %643 = vmatpush2.msra.mxu0 0.0
    %644 = vmatprep.subr.mxu0 0.0
    %645 = vmatpush2.msra.mxu0 0.0
    %646 = vmatprep.subr.mxu0 0.0
    %647 = vmatpush2.msra.mxu0 0.0
    %648 = vmatprep.subr.mxu0 0.0
    %649 = vmatpush2.msra.mxu0 0.0
    %650 = vmatprep.subr.mxu0 0.0
    %651 = vmatpush2.msra.mxu0 0.0
    %652 = vmatprep.subr.mxu0 0.0
    %653 = vmatpush2.msra.mxu0 0.0
    %654 = vmatprep.subr.mxu0 0.0
    %655 = vmatpush2.msra.mxu0 0.0
    %656 = vmatprep.subr.mxu0 0.0
    %657 = vmatpush2.msra.mxu0 0.0
    %658 = vmatprep.subr.mxu0 0.0
    %659 = vmatpush2.msra.mxu0 0.0
    %660 = vmatprep.subr.mxu0 0.0
    %661 = vmatpush2.msra.mxu0 0.0
    %662 = vmatprep.subr.mxu0 0.0
    %663 = vmatpush2.msra.mxu0 0.0
    %664 = vmatprep.subr.mxu0 0.0
    %665 = vmatpush2.msra.mxu0 0.0
    %666 = vmatprep.subr.mxu0 0.0
    %667 = vmatpush2.msra.mxu0 0.0
    %668 = vmatprep.subr.mxu0 0.0
    %669 = vmatpush2.msra.mxu0 0.0
    %670 = vmatprep.mubr.f32.mxu0 0.0
    %671 = vmatmul.mubr.f32.gmra.mxu0 %v559
    %v672 = vpop.f32.mrf.mxu0
    %v673 = vadd.f32 %v480, %v672
    %v674 = vpop.f32.mrf.mxu0
    %675 = vmatprep.mubr.f32.mxu0 0.0
    %676 = vmatmul.mubr.f32.gmra.mxu0 %v562
    %v677 = vpop.f32.mrf.mxu0
    %v678 = vadd.f32 %v485, %v677
    %v679 = vpop.f32.mrf.mxu0
    %680 = vmatprep.mubr.f32.mxu0 0.0
    %681 = vmatmul.mubr.f32.gmra.mxu0 %v565
    %v682 = vpop.f32.mrf.mxu0
    %v683 = vadd.f32 %v490, %v682
    %v684 = vpop.f32.mrf.mxu0
    %685 = vmatprep.mubr.f32.mxu0 0.0
    %686 = vmatmul.mubr.f32.gmra.mxu0 %v568
    %v687 = vpop.f32.mrf.mxu0
    %v688 = vadd.f32 %v495, %v687
    %v689 = vpop.f32.mrf.mxu0
    %690 = vmatprep.mubr.f32.mxu0 0.0
    %691 = vmatmul.mubr.f32.gmra.mxu0 %v571
    %v692 = vpop.f32.mrf.mxu0
    %v693 = vadd.f32 %v500, %v692
    %v694 = vpop.f32.mrf.mxu0
    %695 = vmatprep.mubr.f32.mxu0 0.0
    %696 = vmatmul.mubr.f32.gmra.mxu0 %v574
    %v697 = vpop.f32.mrf.mxu0
    %v698 = vadd.f32 %v505, %v697
    %v699 = vpop.f32.mrf.mxu0
    %700 = vmatprep.mubr.f32.mxu0 0.0
    %701 = vmatmul.mubr.f32.gmra.mxu0 %v577
    %v702 = vpop.f32.mrf.mxu0
    %v703 = vadd.f32 %v510, %v702
    %v704 = vpop.f32.mrf.mxu0
    %705 = vmatprep.mubr.f32.mxu0 0.0
    %706 = vmatmul.mubr.f32.gmra.mxu0 %v580
    %v707 = vpop.f32.mrf.mxu0
    %v708 = vadd.f32 %v515, %v707
    %v709 = vpop.f32.mrf.mxu0
    %710 = vmatprep.mubr.f32.mxu0 0.0
    %711 = vmatmul.mubr.f32.gmra.mxu0 %v583
    %v712 = vpop.f32.mrf.mxu0
    %v713 = vadd.f32 %v520, %v712
    %v714 = vpop.f32.mrf.mxu0
    %715 = vmatprep.mubr.f32.mxu0 0.0
    %716 = vmatmul.mubr.f32.gmra.mxu0 %v586
    %v717 = vpop.f32.mrf.mxu0
    %v718 = vadd.f32 %v525, %v717
    %v719 = vpop.f32.mrf.mxu0
    %720 = vmatprep.mubr.f32.mxu0 0.0
    %721 = vmatmul.mubr.f32.gmra.mxu0 %v589
    %v722 = vpop.f32.mrf.mxu0
    %v723 = vadd.f32 %v530, %v722
    %v724 = vpop.f32.mrf.mxu0
    %725 = vmatprep.mubr.f32.mxu0 0.0
    %726 = vmatmul.mubr.f32.gmra.mxu0 %v592
    %v727 = vpop.f32.mrf.mxu0
    %v728 = vadd.f32 %v535, %v727
    %v729 = vpop.f32.mrf.mxu0
    %730 = vmatprep.mubr.f32.mxu0 0.0
    %731 = vmatmul.mubr.f32.gmra.mxu0 %v595
    %v732 = vpop.f32.mrf.mxu0
    %v733 = vadd.f32 %v540, %v732
    %v734 = vpop.f32.mrf.mxu0
    %735 = vmatprep.mubr.f32.mxu0 0.0
    %736 = vmatmul.mubr.f32.gmra.mxu0 %v598
    %v737 = vpop.f32.mrf.mxu0
    %v738 = vadd.f32 %v545, %v737
    %v739 = vpop.f32.mrf.mxu0
    %740 = vmatprep.mubr.f32.mxu0 0.0
    %741 = vmatmul.mubr.f32.gmra.mxu0 %v601
    %v742 = vpop.f32.mrf.mxu0
    %v743 = vadd.f32 %v550, %v742
    %v744 = vpop.f32.mrf.mxu0
    %745 = vmatprep.mubr.f32.mxu0 0.0
    %746 = vmatmul.mubr.f32.gmra.mxu0 %v604
    %v747 = vpop.f32.mrf.mxu0
    %v748 = vadd.f32 %v555, %v747
    %v749 = vpop.f32.mrf.mxu0
    %750 = vdwg.mxu0
    %s751 = scalar_lea.vmem %s1, 256
    %v752 = vld [vmem:[%s751] sm:$0xff]
    %v753 = vld [vmem:[%s751 + $0x8] sm:$0xff]
    %v754 = vld [vmem:[%s751 + $0x10] sm:$0xff]
    %v755 = vld [vmem:[%s751 + $0x18] sm:$0xff]
    %v756 = vld [vmem:[%s751 + $0x20] sm:$0xff]
    %v757 = vld [vmem:[%s751 + $0x28] sm:$0xff]
    %v758 = vld [vmem:[%s751 + $0x30] sm:$0xff]
    %v759 = vld [vmem:[%s751 + $0x38] sm:$0xff]
    %v760 = vld [vmem:[%s751 + $0x40] sm:$0xff]
    %v761 = vld [vmem:[%s751 + $0x48] sm:$0xff]
    %v762 = vld [vmem:[%s751 + $0x50] sm:$0xff]
    %v763 = vld [vmem:[%s751 + $0x58] sm:$0xff]
    %v764 = vld [vmem:[%s751 + $0x60] sm:$0xff]
    %v765 = vld [vmem:[%s751 + $0x68] sm:$0xff]
    %v766 = vld [vmem:[%s751 + $0x70] sm:$0xff]
    %v767 = vld [vmem:[%s751 + $0x78] sm:$0xff]
    %v769 = vsel %vm72, %v752, 0
    %v772 = vsel %vm72, %v753, 0
    %v775 = vsel %vm72, %v754, 0
    %v778 = vsel %vm72, %v755, 0
    %v781 = vsel %vm72, %v756, 0
    %v784 = vsel %vm72, %v757, 0
    %v787 = vsel %vm72, %v758, 0
    %v790 = vsel %vm72, %v759, 0
    %v793 = vsel %vm72, %v760, 0
    %v796 = vsel %vm72, %v761, 0
    %v799 = vsel %vm72, %v762, 0
    %v802 = vsel %vm72, %v763, 0
    %v805 = vsel %vm72, %v764, 0
    %v808 = vsel %vm72, %v765, 0
    %v811 = vsel %vm72, %v766, 0
    %v814 = vsel %vm72, %v767, 0
    %816 = vmatprep.subr.mxu0 0.0
    %817 = vmatpush1.msra.mxu0 0.0
    %818 = vmatprep.subr.mxu0 0.0
    %819 = vmatpush1.msra.mxu0 0.0
    %820 = vmatprep.subr.mxu0 0.0
    %821 = vmatpush1.msra.mxu0 0.0
    %822 = vmatprep.subr.mxu0 0.0
    %823 = vmatpush1.msra.mxu0 0.0
    %824 = vmatprep.subr.mxu0 0.0
    %825 = vmatpush1.msra.mxu0 0.0
    %826 = vmatprep.subr.mxu0 0.0
    %827 = vmatpush1.msra.mxu0 0.0
    %828 = vmatprep.subr.mxu0 0.0
    %829 = vmatpush1.msra.mxu0 0.0
    %830 = vmatprep.subr.mxu0 0.0
    %831 = vmatpush1.msra.mxu0 0.0
    %832 = vmatprep.subr.mxu0 0.0
    %833 = vmatpush1.msra.mxu0 %v35
    %834 = vmatprep.subr.mxu0 0.0
    %835 = vmatpush1.msra.mxu0 %v34
    %836 = vmatprep.subr.mxu0 0.0
    %837 = vmatpush1.msra.mxu0 %v33
    %838 = vmatprep.subr.mxu0 0.0
    %839 = vmatpush1.msra.mxu0 %v32
    %840 = vmatprep.subr.mxu0 0.0
    %841 = vmatpush1.msra.mxu0 %v31
    %842 = vmatprep.subr.mxu0 0.0
    %843 = vmatpush1.msra.mxu0 %v30
    %844 = vmatprep.subr.mxu0 0.0
    %845 = vmatpush1.msra.mxu0 %v29
    %846 = vmatprep.subr.mxu0 0.0
    %847 = vmatpush1.msra.mxu0 %v28
    %848 = vmatprep.subr.mxu0 0.0
    %849 = vmatpush2.msra.mxu0 0.0
    %850 = vmatprep.subr.mxu0 0.0
    %851 = vmatpush2.msra.mxu0 0.0
    %852 = vmatprep.subr.mxu0 0.0
    %853 = vmatpush2.msra.mxu0 0.0
    %854 = vmatprep.subr.mxu0 0.0
    %855 = vmatpush2.msra.mxu0 0.0
    %856 = vmatprep.subr.mxu0 0.0
    %857 = vmatpush2.msra.mxu0 0.0
    %858 = vmatprep.subr.mxu0 0.0
    %859 = vmatpush2.msra.mxu0 0.0
    %860 = vmatprep.subr.mxu0 0.0
    %861 = vmatpush2.msra.mxu0 0.0
    %862 = vmatprep.subr.mxu0 0.0
    %863 = vmatpush2.msra.mxu0 0.0
    %864 = vmatprep.subr.mxu0 0.0
    %865 = vmatpush2.msra.mxu0 0.0
    %866 = vmatprep.subr.mxu0 0.0
    %867 = vmatpush2.msra.mxu0 0.0
    %868 = vmatprep.subr.mxu0 0.0
    %869 = vmatpush2.msra.mxu0 0.0
    %870 = vmatprep.subr.mxu0 0.0
    %871 = vmatpush2.msra.mxu0 0.0
    %872 = vmatprep.subr.mxu0 0.0
    %873 = vmatpush2.msra.mxu0 0.0
    %874 = vmatprep.subr.mxu0 0.0
    %875 = vmatpush2.msra.mxu0 0.0
    %876 = vmatprep.subr.mxu0 0.0
    %877 = vmatpush2.msra.mxu0 0.0
    %878 = vmatprep.subr.mxu0 0.0
    %879 = vmatpush2.msra.mxu0 0.0
    %880 = vmatprep.mubr.f32.mxu0 0.0
    %881 = vmatmul.mubr.f32.gmra.mxu0 %v769
    %v882 = vpop.f32.mrf.mxu0
    %v883 = vadd.f32 0.0, %v882
    %v884 = vpop.f32.mrf.mxu0
    %885 = vmatprep.mubr.f32.mxu0 0.0
    %886 = vmatmul.mubr.f32.gmra.mxu0 %v772
    %v887 = vpop.f32.mrf.mxu0
    %v888 = vadd.f32 0.0, %v887
    %v889 = vpop.f32.mrf.mxu0
    %890 = vmatprep.mubr.f32.mxu0 0.0
    %891 = vmatmul.mubr.f32.gmra.mxu0 %v775
    %v892 = vpop.f32.mrf.mxu0
    %v893 = vadd.f32 0.0, %v892
    %v894 = vpop.f32.mrf.mxu0
    %895 = vmatprep.mubr.f32.mxu0 0.0
    %896 = vmatmul.mubr.f32.gmra.mxu0 %v778
    %v897 = vpop.f32.mrf.mxu0
    %v898 = vadd.f32 0.0, %v897
    %v899 = vpop.f32.mrf.mxu0
    %900 = vmatprep.mubr.f32.mxu0 0.0
    %901 = vmatmul.mubr.f32.gmra.mxu0 %v781
    %v902 = vpop.f32.mrf.mxu0
    %v903 = vadd.f32 0.0, %v902
    %v904 = vpop.f32.mrf.mxu0
    %905 = vmatprep.mubr.f32.mxu0 0.0
    %906 = vmatmul.mubr.f32.gmra.mxu0 %v784
    %v907 = vpop.f32.mrf.mxu0
    %v908 = vadd.f32 0.0, %v907
    %v909 = vpop.f32.mrf.mxu0
    %910 = vmatprep.mubr.f32.mxu0 0.0
    %911 = vmatmul.mubr.f32.gmra.mxu0 %v787
    %v912 = vpop.f32.mrf.mxu0
    %v913 = vadd.f32 0.0, %v912
    %v914 = vpop.f32.mrf.mxu0
    %915 = vmatprep.mubr.f32.mxu0 0.0
    %916 = vmatmul.mubr.f32.gmra.mxu0 %v790
    %v917 = vpop.f32.mrf.mxu0
    %v918 = vadd.f32 0.0, %v917
    %v919 = vpop.f32.mrf.mxu0
    %920 = vmatprep.mubr.f32.mxu0 0.0
    %921 = vmatmul.mubr.f32.gmra.mxu0 %v793
    %v922 = vpop.f32.mrf.mxu0
    %v923 = vadd.f32 0.0, %v922
    %v924 = vpop.f32.mrf.mxu0
    %925 = vmatprep.mubr.f32.mxu0 0.0
    %926 = vmatmul.mubr.f32.gmra.mxu0 %v796
    %v927 = vpop.f32.mrf.mxu0
    %v928 = vadd.f32 0.0, %v927
    %v929 = vpop.f32.mrf.mxu0
    %930 = vmatprep.mubr.f32.mxu0 0.0
    %931 = vmatmul.mubr.f32.gmra.mxu0 %v799
    %v932 = vpop.f32.mrf.mxu0
    %v933 = vadd.f32 0.0, %v932
    %v934 = vpop.f32.mrf.mxu0
    %935 = vmatprep.mubr.f32.mxu0 0.0
    %936 = vmatmul.mubr.f32.gmra.mxu0 %v802
    %v937 = vpop.f32.mrf.mxu0
    %v938 = vadd.f32 0.0, %v937
    %v939 = vpop.f32.mrf.mxu0
    %940 = vmatprep.mubr.f32.mxu0 0.0
    %941 = vmatmul.mubr.f32.gmra.mxu0 %v805
    %v942 = vpop.f32.mrf.mxu0
    %v943 = vadd.f32 0.0, %v942
    %v944 = vpop.f32.mrf.mxu0
    %945 = vmatprep.mubr.f32.mxu0 0.0
    %946 = vmatmul.mubr.f32.gmra.mxu0 %v808
    %v947 = vpop.f32.mrf.mxu0
    %v948 = vadd.f32 0.0, %v947
    %v949 = vpop.f32.mrf.mxu0
    %950 = vmatprep.mubr.f32.mxu0 0.0
    %951 = vmatmul.mubr.f32.gmra.mxu0 %v811
    %v952 = vpop.f32.mrf.mxu0
    %v953 = vadd.f32 0.0, %v952
    %v954 = vpop.f32.mrf.mxu0
    %955 = vmatprep.mubr.f32.mxu0 0.0
    %956 = vmatmul.mubr.f32.gmra.mxu0 %v814
    %v957 = vpop.f32.mrf.mxu0
    %v958 = vadd.f32 0.0, %v957
    %v959 = vpop.f32.mrf.mxu0
    %960 = vdwg.mxu0
    %v961 = vadd.f32 %v673, %v883
    %v962 = vadd.f32 %v678, %v888
    %v963 = vadd.f32 %v683, %v893
    %v964 = vadd.f32 %v688, %v898
    %v965 = vadd.f32 %v693, %v903
    %v966 = vadd.f32 %v698, %v908
    %v967 = vadd.f32 %v703, %v913
    %v968 = vadd.f32 %v708, %v918
    %v969 = vadd.f32 %v713, %v923
    %v970 = vadd.f32 %v718, %v928
    %v971 = vadd.f32 %v723, %v933
    %v972 = vadd.f32 %v728, %v938
    %v973 = vadd.f32 %v733, %v943
    %v974 = vadd.f32 %v738, %v948
    %v975 = vadd.f32 %v743, %v953
    %v976 = vadd.f32 %v748, %v958
    %v977 = vadd.s32 %v46, 1
    %vm978 = vcmp.eq.s32.totalorder %v37, %v977
    %vm979 = vcmp.eq.s32.totalorder %v38, %v977
    %vm980 = vcmp.eq.s32.totalorder %v39, %v977
    %vm981 = vcmp.eq.s32.totalorder %v40, %v977
    %vm982 = vcmp.eq.s32.totalorder %v41, %v977
    %vm983 = vcmp.eq.s32.totalorder %v42, %v977
    %vm984 = vcmp.eq.s32.totalorder %v43, %v977
    %vm985 = vcmp.eq.s32.totalorder %v44, %v977
    %v986 = vsel %vm978, 1, 0
    %v987 = vsel %vm979, 1, 0
    %v988 = vsel %vm980, 1, 0
    %v989 = vsel %vm981, 1, 0
    %v990 = vsel %vm982, 1, 0
    %v991 = vsel %vm983, 1, 0
    %v992 = vsel %vm984, 1, 0
    %v993 = vsel %vm985, 1, 0
    %v994 = vcvt.s32.f32 %v986
    %v995 = vcvt.s32.f32 %v987
    %v996 = vcvt.s32.f32 %v988
    %v997 = vcvt.s32.f32 %v989
    %v998 = vcvt.s32.f32 %v990
    %v999 = vcvt.s32.f32 %v991
    %v1000 = vcvt.s32.f32 %v992
    %v1001 = vcvt.s32.f32 %v993
    %1002 = vmatprep.subr.mxu0 0.0
    %1003 = vmatpush1.msra.mxu0 0.0
    %1004 = vmatprep.subr.mxu0 0.0
    %1005 = vmatpush1.msra.mxu0 0.0
    %1006 = vmatprep.subr.mxu0 0.0
    %1007 = vmatpush1.msra.mxu0 0.0
    %1008 = vmatprep.subr.mxu0 0.0
    %1009 = vmatpush1.msra.mxu0 0.0
    %1010 = vmatprep.subr.mxu0 0.0
    %1011 = vmatpush1.msra.mxu0 0.0
    %1012 = vmatprep.subr.mxu0 0.0
    %1013 = vmatpush1.msra.mxu0 0.0
    %1014 = vmatprep.subr.mxu0 0.0
    %1015 = vmatpush1.msra.mxu0 0.0
    %1016 = vmatprep.subr.mxu0 0.0
    %1017 = vmatpush1.msra.mxu0 0.0
    %1018 = vmatprep.subr.mxu0 0.0
    %1019 = vmatpush1.msra.mxu0 %v1001
    %1020 = vmatprep.subr.mxu0 0.0
    %1021 = vmatpush1.msra.mxu0 %v1000
    %1022 = vmatprep.subr.mxu0 0.0
    %1023 = vmatpush1.msra.mxu0 %v999
    %1024 = vmatprep.subr.mxu0 0.0
    %1025 = vmatpush1.msra.mxu0 %v998
    %1026 = vmatprep.subr.mxu0 0.0
    %1027 = vmatpush1.msra.mxu0 %v997
    %1028 = vmatprep.subr.mxu0 0.0
    %1029 = vmatpush1.msra.mxu0 %v996
    %1030 = vmatprep.subr.mxu0 0.0
    %1031 = vmatpush1.msra.mxu0 %v995
    %1032 = vmatprep.subr.mxu0 0.0
    %1033 = vmatpush1.msra.mxu0 %v994
    %1034 = vmatprep.subr.mxu0 0.0
    %1035 = vmatpush2.msra.mxu0 0.0
    %1036 = vmatprep.subr.mxu0 0.0
    %1037 = vmatpush2.msra.mxu0 0.0
    %1038 = vmatprep.subr.mxu0 0.0
    %1039 = vmatpush2.msra.mxu0 0.0
    %1040 = vmatprep.subr.mxu0 0.0
    %1041 = vmatpush2.msra.mxu0 0.0
    %1042 = vmatprep.subr.mxu0 0.0
    %1043 = vmatpush2.msra.mxu0 0.0
    %1044 = vmatprep.subr.mxu0 0.0
    %1045 = vmatpush2.msra.mxu0 0.0
    %1046 = vmatprep.subr.mxu0 0.0
    %1047 = vmatpush2.msra.mxu0 0.0
    %1048 = vmatprep.subr.mxu0 0.0
    %1049 = vmatpush2.msra.mxu0 0.0
    %1050 = vmatprep.subr.mxu0 0.0
    %1051 = vmatpush2.msra.mxu0 0.0
    %1052 = vmatprep.subr.mxu0 0.0
    %1053 = vmatpush2.msra.mxu0 0.0
    %1054 = vmatprep.subr.mxu0 0.0
    %1055 = vmatpush2.msra.mxu0 0.0
    %1056 = vmatprep.subr.mxu0 0.0
    %1057 = vmatpush2.msra.mxu0 0.0
    %1058 = vmatprep.subr.mxu0 0.0
    %1059 = vmatpush2.msra.mxu0 0.0
    %1060 = vmatprep.subr.mxu0 0.0
    %1061 = vmatpush2.msra.mxu0 0.0
    %1062 = vmatprep.subr.mxu0 0.0
    %1063 = vmatpush2.msra.mxu0 0.0
    %1064 = vmatprep.subr.mxu0 0.0
    %1065 = vmatpush2.msra.mxu0 0.0
    %1066 = vmatprep.mubr.f32.mxu0 0.0
    %1067 = vmatmul.mubr.f32.gmra.mxu0 %v74
    %v1068 = vpop.f32.mrf.mxu0
    %v1069 = vadd.f32 0.0, %v1068
    %v1070 = vpop.f32.mrf.mxu0
    %1071 = vmatprep.mubr.f32.mxu0 0.0
    %1072 = vmatmul.mubr.f32.gmra.mxu0 %v77
    %v1073 = vpop.f32.mrf.mxu0
    %v1074 = vadd.f32 0.0, %v1073
    %v1075 = vpop.f32.mrf.mxu0
    %1076 = vmatprep.mubr.f32.mxu0 0.0
    %1077 = vmatmul.mubr.f32.gmra.mxu0 %v80
    %v1078 = vpop.f32.mrf.mxu0
    %v1079 = vadd.f32 0.0, %v1078
    %v1080 = vpop.f32.mrf.mxu0
    %1081 = vmatprep.mubr.f32.mxu0 0.0
    %1082 = vmatmul.mubr.f32.gmra.mxu0 %v83
    %v1083 = vpop.f32.mrf.mxu0
    %v1084 = vadd.f32 0.0, %v1083
    %v1085 = vpop.f32.mrf.mxu0
    %1086 = vmatprep.mubr.f32.mxu0 0.0
    %1087 = vmatmul.mubr.f32.gmra.mxu0 %v86
    %v1088 = vpop.f32.mrf.mxu0
    %v1089 = vadd.f32 0.0, %v1088
    %v1090 = vpop.f32.mrf.mxu0
    %1091 = vmatprep.mubr.f32.mxu0 0.0
    %1092 = vmatmul.mubr.f32.gmra.mxu0 %v89
    %v1093 = vpop.f32.mrf.mxu0
    %v1094 = vadd.f32 0.0, %v1093
    %v1095 = vpop.f32.mrf.mxu0
    %1096 = vmatprep.mubr.f32.mxu0 0.0
    %1097 = vmatmul.mubr.f32.gmra.mxu0 %v92
    %v1098 = vpop.f32.mrf.mxu0
    %v1099 = vadd.f32 0.0, %v1098
    %v1100 = vpop.f32.mrf.mxu0
    %1101 = vmatprep.mubr.f32.mxu0 0.0
    %1102 = vmatmul.mubr.f32.gmra.mxu0 %v95
    %v1103 = vpop.f32.mrf.mxu0
    %v1104 = vadd.f32 0.0, %v1103
    %v1105 = vpop.f32.mrf.mxu0
    %1106 = vdwg.mxu0
    %s1107 = scalar_lea.vmem %s1, 384
    %v1108 = vld [vmem:[%s1107] sm:$0xff]
    %v1109 = vld [vmem:[%s1107 + $0x8] sm:$0xff]
    %v1110 = vld [vmem:[%s1107 + $0x10] sm:$0xff]
    %v1111 = vld [vmem:[%s1107 + $0x18] sm:$0xff]
    %v1112 = vld [vmem:[%s1107 + $0x20] sm:$0xff]
    %v1113 = vld [vmem:[%s1107 + $0x28] sm:$0xff]
    %v1114 = vld [vmem:[%s1107 + $0x30] sm:$0xff]
    %v1115 = vld [vmem:[%s1107 + $0x38] sm:$0xff]
    %v1116 = vld [vmem:[%s1107 + $0x40] sm:$0xff]
    %v1117 = vld [vmem:[%s1107 + $0x48] sm:$0xff]
    %v1118 = vld [vmem:[%s1107 + $0x50] sm:$0xff]
    %v1119 = vld [vmem:[%s1107 + $0x58] sm:$0xff]
    %v1120 = vld [vmem:[%s1107 + $0x60] sm:$0xff]
    %v1121 = vld [vmem:[%s1107 + $0x68] sm:$0xff]
    %v1122 = vld [vmem:[%s1107 + $0x70] sm:$0xff]
    %v1123 = vld [vmem:[%s1107 + $0x78] sm:$0xff]
    %v1125 = vsel %vm72, %v1108, 0
    %v1128 = vsel %vm72, %v1109, 0
    %v1131 = vsel %vm72, %v1110, 0
    %v1134 = vsel %vm72, %v1111, 0
    %v1137 = vsel %vm72, %v1112, 0
    %v1140 = vsel %vm72, %v1113, 0
    %v1143 = vsel %vm72, %v1114, 0
    %v1146 = vsel %vm72, %v1115, 0
    %v1149 = vsel %vm72, %v1116, 0
    %v1152 = vsel %vm72, %v1117, 0
    %v1155 = vsel %vm72, %v1118, 0
    %v1158 = vsel %vm72, %v1119, 0
    %v1161 = vsel %vm72, %v1120, 0
    %v1164 = vsel %vm72, %v1121, 0
    %v1167 = vsel %vm72, %v1122, 0
    %v1170 = vsel %vm72, %v1123, 0
    %1172 = vmatprep.subr.mxu0 0.0
    %1173 = vmatpush1.msra.mxu0 0.0
    %1174 = vmatprep.subr.mxu0 0.0
    %1175 = vmatpush1.msra.mxu0 0.0
    %1176 = vmatprep.subr.mxu0 0.0
    %1177 = vmatpush1.msra.mxu0 0.0
    %1178 = vmatprep.subr.mxu0 0.0
    %1179 = vmatpush1.msra.mxu0 0.0
    %1180 = vmatprep.subr.mxu0 0.0
    %1181 = vmatpush1.msra.mxu0 0.0
    %1182 = vmatprep.subr.mxu0 0.0
    %1183 = vmatpush1.msra.mxu0 0.0
    %1184 = vmatprep.subr.mxu0 0.0
    %1185 = vmatpush1.msra.mxu0 0.0
    %1186 = vmatprep.subr.mxu0 0.0
    %1187 = vmatpush1.msra.mxu0 0.0
    %1188 = vmatprep.subr.mxu0 0.0
    %1189 = vmatpush1.msra.mxu0 %v1104
    %1190 = vmatprep.subr.mxu0 0.0
    %1191 = vmatpush1.msra.mxu0 %v1099
    %1192 = vmatprep.subr.mxu0 0.0
    %1193 = vmatpush1.msra.mxu0 %v1094
    %1194 = vmatprep.subr.mxu0 0.0
    %1195 = vmatpush1.msra.mxu0 %v1089
    %1196 = vmatprep.subr.mxu0 0.0
    %1197 = vmatpush1.msra.mxu0 %v1084
    %1198 = vmatprep.subr.mxu0 0.0
    %1199 = vmatpush1.msra.mxu0 %v1079
    %1200 = vmatprep.subr.mxu0 0.0
    %1201 = vmatpush1.msra.mxu0 %v1074
    %1202 = vmatprep.subr.mxu0 0.0
    %1203 = vmatpush1.msra.mxu0 %v1069
    %1204 = vmatprep.subr.mxu0 0.0
    %1205 = vmatpush2.msra.mxu0 0.0
    %1206 = vmatprep.subr.mxu0 0.0
    %1207 = vmatpush2.msra.mxu0 0.0
    %1208 = vmatprep.subr.mxu0 0.0
    %1209 = vmatpush2.msra.mxu0 0.0
    %1210 = vmatprep.subr.mxu0 0.0
    %1211 = vmatpush2.msra.mxu0 0.0
    %1212 = vmatprep.subr.mxu0 0.0
    %1213 = vmatpush2.msra.mxu0 0.0
    %1214 = vmatprep.subr.mxu0 0.0
    %1215 = vmatpush2.msra.mxu0 0.0
    %1216 = vmatprep.subr.mxu0 0.0
    %1217 = vmatpush2.msra.mxu0 0.0
    %1218 = vmatprep.subr.mxu0 0.0
    %1219 = vmatpush2.msra.mxu0 0.0
    %1220 = vmatprep.subr.mxu0 0.0
    %1221 = vmatpush2.msra.mxu0 0.0
    %1222 = vmatprep.subr.mxu0 0.0
    %1223 = vmatpush2.msra.mxu0 0.0
    %1224 = vmatprep.subr.mxu0 0.0
    %1225 = vmatpush2.msra.mxu0 0.0
    %1226 = vmatprep.subr.mxu0 0.0
    %1227 = vmatpush2.msra.mxu0 0.0
    %1228 = vmatprep.subr.mxu0 0.0
    %1229 = vmatpush2.msra.mxu0 0.0
    %1230 = vmatprep.subr.mxu0 0.0
    %1231 = vmatpush2.msra.mxu0 0.0
    %1232 = vmatprep.subr.mxu0 0.0
    %1233 = vmatpush2.msra.mxu0 0.0
    %1234 = vmatprep.subr.mxu0 0.0
    %1235 = vmatpush2.msra.mxu0 0.0
    %1236 = vmatprep.mubr.f32.mxu0 0.0
    %1237 = vmatmul.mubr.f32.gmra.mxu0 %v1125
    %v1238 = vpop.f32.mrf.mxu0
    %v1239 = vadd.f32 0.0, %v1238
    %v1240 = vpop.f32.mrf.mxu0
    %1241 = vmatprep.mubr.f32.mxu0 0.0
    %1242 = vmatmul.mubr.f32.gmra.mxu0 %v1128
    %v1243 = vpop.f32.mrf.mxu0
    %v1244 = vadd.f32 0.0, %v1243
    %v1245 = vpop.f32.mrf.mxu0
    %1246 = vmatprep.mubr.f32.mxu0 0.0
    %1247 = vmatmul.mubr.f32.gmra.mxu0 %v1131
    %v1248 = vpop.f32.mrf.mxu0
    %v1249 = vadd.f32 0.0, %v1248
    %v1250 = vpop.f32.mrf.mxu0
    %1251 = vmatprep.mubr.f32.mxu0 0.0
    %1252 = vmatmul.mubr.f32.gmra.mxu0 %v1134
    %v1253 = vpop.f32.mrf.mxu0
    %v1254 = vadd.f32 0.0, %v1253
    %v1255 = vpop.f32.mrf.mxu0
    %1256 = vmatprep.mubr.f32.mxu0 0.0
    %1257 = vmatmul.mubr.f32.gmra.mxu0 %v1137
    %v1258 = vpop.f32.mrf.mxu0
    %v1259 = vadd.f32 0.0, %v1258
    %v1260 = vpop.f32.mrf.mxu0
    %1261 = vmatprep.mubr.f32.mxu0 0.0
    %1262 = vmatmul.mubr.f32.gmra.mxu0 %v1140
    %v1263 = vpop.f32.mrf.mxu0
    %v1264 = vadd.f32 0.0, %v1263
    %v1265 = vpop.f32.mrf.mxu0
    %1266 = vmatprep.mubr.f32.mxu0 0.0
    %1267 = vmatmul.mubr.f32.gmra.mxu0 %v1143
    %v1268 = vpop.f32.mrf.mxu0
    %v1269 = vadd.f32 0.0, %v1268
    %v1270 = vpop.f32.mrf.mxu0
    %1271 = vmatprep.mubr.f32.mxu0 0.0
    %1272 = vmatmul.mubr.f32.gmra.mxu0 %v1146
    %v1273 = vpop.f32.mrf.mxu0
    %v1274 = vadd.f32 0.0, %v1273
    %v1275 = vpop.f32.mrf.mxu0
    %1276 = vmatprep.mubr.f32.mxu0 0.0
    %1277 = vmatmul.mubr.f32.gmra.mxu0 %v1149
    %v1278 = vpop.f32.mrf.mxu0
    %v1279 = vadd.f32 0.0, %v1278
    %v1280 = vpop.f32.mrf.mxu0
    %1281 = vmatprep.mubr.f32.mxu0 0.0
    %1282 = vmatmul.mubr.f32.gmra.mxu0 %v1152
    %v1283 = vpop.f32.mrf.mxu0
    %v1284 = vadd.f32 0.0, %v1283
    %v1285 = vpop.f32.mrf.mxu0
    %1286 = vmatprep.mubr.f32.mxu0 0.0
    %1287 = vmatmul.mubr.f32.gmra.mxu0 %v1155
    %v1288 = vpop.f32.mrf.mxu0
    %v1289 = vadd.f32 0.0, %v1288
    %v1290 = vpop.f32.mrf.mxu0
    %1291 = vmatprep.mubr.f32.mxu0 0.0
    %1292 = vmatmul.mubr.f32.gmra.mxu0 %v1158
    %v1293 = vpop.f32.mrf.mxu0
    %v1294 = vadd.f32 0.0, %v1293
    %v1295 = vpop.f32.mrf.mxu0
    %1296 = vmatprep.mubr.f32.mxu0 0.0
    %1297 = vmatmul.mubr.f32.gmra.mxu0 %v1161
    %v1298 = vpop.f32.mrf.mxu0
    %v1299 = vadd.f32 0.0, %v1298
    %v1300 = vpop.f32.mrf.mxu0
    %1301 = vmatprep.mubr.f32.mxu0 0.0
    %1302 = vmatmul.mubr.f32.gmra.mxu0 %v1164
    %v1303 = vpop.f32.mrf.mxu0
    %v1304 = vadd.f32 0.0, %v1303
    %v1305 = vpop.f32.mrf.mxu0
    %1306 = vmatprep.mubr.f32.mxu0 0.0
    %1307 = vmatmul.mubr.f32.gmra.mxu0 %v1167
    %v1308 = vpop.f32.mrf.mxu0
    %v1309 = vadd.f32 0.0, %v1308
    %v1310 = vpop.f32.mrf.mxu0
    %1311 = vmatprep.mubr.f32.mxu0 0.0
    %1312 = vmatmul.mubr.f32.gmra.mxu0 %v1170
    %v1313 = vpop.f32.mrf.mxu0
    %v1314 = vadd.f32 0.0, %v1313
    %v1315 = vpop.f32.mrf.mxu0
    %1316 = vdwg.mxu0
    %v1317 = vadd.f32 %v961, %v1239
    %v1318 = vadd.f32 %v962, %v1244
    %v1319 = vadd.f32 %v963, %v1249
    %v1320 = vadd.f32 %v964, %v1254
    %v1321 = vadd.f32 %v965, %v1259
    %v1322 = vadd.f32 %v966, %v1264
    %v1323 = vadd.f32 %v967, %v1269
    %v1324 = vadd.f32 %v968, %v1274
    %v1325 = vadd.f32 %v969, %v1279
    %v1326 = vadd.f32 %v970, %v1284
    %v1327 = vadd.f32 %v971, %v1289
    %v1328 = vadd.f32 %v972, %v1294
    %v1329 = vadd.f32 %v973, %v1299
    %v1330 = vadd.f32 %v974, %v1304
    %v1331 = vadd.f32 %v975, %v1309
    %v1332 = vadd.f32 %v976, %v1314
    %v1333 = vadd.s32 %v46, 2
    %vm1334 = vcmp.eq.s32.totalorder %v37, %v1333
    %vm1335 = vcmp.eq.s32.totalorder %v38, %v1333
    %vm1336 = vcmp.eq.s32.totalorder %v39, %v1333
    %vm1337 = vcmp.eq.s32.totalorder %v40, %v1333
    %vm1338 = vcmp.eq.s32.totalorder %v41, %v1333
    %vm1339 = vcmp.eq.s32.totalorder %v42, %v1333
    %vm1340 = vcmp.eq.s32.totalorder %v43, %v1333
    %vm1341 = vcmp.eq.s32.totalorder %v44, %v1333
    %v1342 = vsel %vm1334, 1, 0
    %v1343 = vsel %vm1335, 1, 0
    %v1344 = vsel %vm1336, 1, 0
    %v1345 = vsel %vm1337, 1, 0
    %v1346 = vsel %vm1338, 1, 0
    %v1347 = vsel %vm1339, 1, 0
    %v1348 = vsel %vm1340, 1, 0
    %v1349 = vsel %vm1341, 1, 0
    %v1350 = vcvt.s32.f32 %v1342
    %v1351 = vcvt.s32.f32 %v1343
    %v1352 = vcvt.s32.f32 %v1344
    %v1353 = vcvt.s32.f32 %v1345
    %v1354 = vcvt.s32.f32 %v1346
    %v1355 = vcvt.s32.f32 %v1347
    %v1356 = vcvt.s32.f32 %v1348
    %v1357 = vcvt.s32.f32 %v1349
    %1358 = vmatprep.subr.mxu0 0.0
    %1359 = vmatpush1.msra.mxu0 0.0
    %1360 = vmatprep.subr.mxu0 0.0
    %1361 = vmatpush1.msra.mxu0 0.0
    %1362 = vmatprep.subr.mxu0 0.0
    %1363 = vmatpush1.msra.mxu0 0.0
    %1364 = vmatprep.subr.mxu0 0.0
    %1365 = vmatpush1.msra.mxu0 0.0
    %1366 = vmatprep.subr.mxu0 0.0
    %1367 = vmatpush1.msra.mxu0 0.0
    %1368 = vmatprep.subr.mxu0 0.0
    %1369 = vmatpush1.msra.mxu0 0.0
    %1370 = vmatprep.subr.mxu0 0.0
    %1371 = vmatpush1.msra.mxu0 0.0
    %1372 = vmatprep.subr.mxu0 0.0
    %1373 = vmatpush1.msra.mxu0 0.0
    %1374 = vmatprep.subr.mxu0 0.0
    %1375 = vmatpush1.msra.mxu0 %v1357
    %1376 = vmatprep.subr.mxu0 0.0
    %1377 = vmatpush1.msra.mxu0 %v1356
    %1378 = vmatprep.subr.mxu0 0.0
    %1379 = vmatpush1.msra.mxu0 %v1355
    %1380 = vmatprep.subr.mxu0 0.0
    %1381 = vmatpush1.msra.mxu0 %v1354
    %1382 = vmatprep.subr.mxu0 0.0
    %1383 = vmatpush1.msra.mxu0 %v1353
    %1384 = vmatprep.subr.mxu0 0.0
    %1385 = vmatpush1.msra.mxu0 %v1352
    %1386 = vmatprep.subr.mxu0 0.0
    %1387 = vmatpush1.msra.mxu0 %v1351
    %1388 = vmatprep.subr.mxu0 0.0
    %1389 = vmatpush1.msra.mxu0 %v1350
    %1390 = vmatprep.subr.mxu0 0.0
    %1391 = vmatpush2.msra.mxu0 0.0
    %1392 = vmatprep.subr.mxu0 0.0
    %1393 = vmatpush2.msra.mxu0 0.0
    %1394 = vmatprep.subr.mxu0 0.0
    %1395 = vmatpush2.msra.mxu0 0.0
    %1396 = vmatprep.subr.mxu0 0.0
    %1397 = vmatpush2.msra.mxu0 0.0
    %1398 = vmatprep.subr.mxu0 0.0
    %1399 = vmatpush2.msra.mxu0 0.0
    %1400 = vmatprep.subr.mxu0 0.0
    %1401 = vmatpush2.msra.mxu0 0.0
    %1402 = vmatprep.subr.mxu0 0.0
    %1403 = vmatpush2.msra.mxu0 0.0
    %1404 = vmatprep.subr.mxu0 0.0
    %1405 = vmatpush2.msra.mxu0 0.0
    %1406 = vmatprep.subr.mxu0 0.0
    %1407 = vmatpush2.msra.mxu0 0.0
    %1408 = vmatprep.subr.mxu0 0.0
    %1409 = vmatpush2.msra.mxu0 0.0
    %1410 = vmatprep.subr.mxu0 0.0
    %1411 = vmatpush2.msra.mxu0 0.0
    %1412 = vmatprep.subr.mxu0 0.0
    %1413 = vmatpush2.msra.mxu0 0.0
    %1414 = vmatprep.subr.mxu0 0.0
    %1415 = vmatpush2.msra.mxu0 0.0
    %1416 = vmatprep.subr.mxu0 0.0
    %1417 = vmatpush2.msra.mxu0 0.0
    %1418 = vmatprep.subr.mxu0 0.0
    %1419 = vmatpush2.msra.mxu0 0.0
    %1420 = vmatprep.subr.mxu0 0.0
    %1421 = vmatpush2.msra.mxu0 0.0
    %1422 = vmatprep.mubr.f32.mxu0 0.0
    %1423 = vmatmul.mubr.f32.gmra.mxu0 %v74
    %v1424 = vpop.f32.mrf.mxu0
    %v1425 = vadd.f32 0.0, %v1424
    %v1426 = vpop.f32.mrf.mxu0
    %1427 = vmatprep.mubr.f32.mxu0 0.0
    %1428 = vmatmul.mubr.f32.gmra.mxu0 %v77
    %v1429 = vpop.f32.mrf.mxu0
    %v1430 = vadd.f32 0.0, %v1429
    %v1431 = vpop.f32.mrf.mxu0
    %1432 = vmatprep.mubr.f32.mxu0 0.0
    %1433 = vmatmul.mubr.f32.gmra.mxu0 %v80
    %v1434 = vpop.f32.mrf.mxu0
    %v1435 = vadd.f32 0.0, %v1434
    %v1436 = vpop.f32.mrf.mxu0
    %1437 = vmatprep.mubr.f32.mxu0 0.0
    %1438 = vmatmul.mubr.f32.gmra.mxu0 %v83
    %v1439 = vpop.f32.mrf.mxu0
    %v1440 = vadd.f32 0.0, %v1439
    %v1441 = vpop.f32.mrf.mxu0
    %1442 = vmatprep.mubr.f32.mxu0 0.0
    %1443 = vmatmul.mubr.f32.gmra.mxu0 %v86
    %v1444 = vpop.f32.mrf.mxu0
    %v1445 = vadd.f32 0.0, %v1444
    %v1446 = vpop.f32.mrf.mxu0
    %1447 = vmatprep.mubr.f32.mxu0 0.0
    %1448 = vmatmul.mubr.f32.gmra.mxu0 %v89
    %v1449 = vpop.f32.mrf.mxu0
    %v1450 = vadd.f32 0.0, %v1449
    %v1451 = vpop.f32.mrf.mxu0
    %1452 = vmatprep.mubr.f32.mxu0 0.0
    %1453 = vmatmul.mubr.f32.gmra.mxu0 %v92
    %v1454 = vpop.f32.mrf.mxu0
    %v1455 = vadd.f32 0.0, %v1454
    %v1456 = vpop.f32.mrf.mxu0
    %1457 = vmatprep.mubr.f32.mxu0 0.0
    %1458 = vmatmul.mubr.f32.gmra.mxu0 %v95
    %v1459 = vpop.f32.mrf.mxu0
    %v1460 = vadd.f32 0.0, %v1459
    %v1461 = vpop.f32.mrf.mxu0
    %1462 = vdwg.mxu0
    %s1463 = scalar_lea.vmem %s1, 512
    %v1464 = vld [vmem:[%s1463] sm:$0xff]
    %v1465 = vld [vmem:[%s1463 + $0x8] sm:$0xff]
    %v1466 = vld [vmem:[%s1463 + $0x10] sm:$0xff]
    %v1467 = vld [vmem:[%s1463 + $0x18] sm:$0xff]
    %v1468 = vld [vmem:[%s1463 + $0x20] sm:$0xff]
    %v1469 = vld [vmem:[%s1463 + $0x28] sm:$0xff]
    %v1470 = vld [vmem:[%s1463 + $0x30] sm:$0xff]
    %v1471 = vld [vmem:[%s1463 + $0x38] sm:$0xff]
    %v1472 = vld [vmem:[%s1463 + $0x40] sm:$0xff]
    %v1473 = vld [vmem:[%s1463 + $0x48] sm:$0xff]
    %v1474 = vld [vmem:[%s1463 + $0x50] sm:$0xff]
    %v1475 = vld [vmem:[%s1463 + $0x58] sm:$0xff]
    %v1476 = vld [vmem:[%s1463 + $0x60] sm:$0xff]
    %v1477 = vld [vmem:[%s1463 + $0x68] sm:$0xff]
    %v1478 = vld [vmem:[%s1463 + $0x70] sm:$0xff]
    %v1479 = vld [vmem:[%s1463 + $0x78] sm:$0xff]
    %v1481 = vsel %vm72, %v1464, 0
    %v1484 = vsel %vm72, %v1465, 0
    %v1487 = vsel %vm72, %v1466, 0
    %v1490 = vsel %vm72, %v1467, 0
    %v1493 = vsel %vm72, %v1468, 0
    %v1496 = vsel %vm72, %v1469, 0
    %v1499 = vsel %vm72, %v1470, 0
    %v1502 = vsel %vm72, %v1471, 0
    %v1505 = vsel %vm72, %v1472, 0
    %v1508 = vsel %vm72, %v1473, 0
    %v1511 = vsel %vm72, %v1474, 0
    %v1514 = vsel %vm72, %v1475, 0
    %v1517 = vsel %vm72, %v1476, 0
    %v1520 = vsel %vm72, %v1477, 0
    %v1523 = vsel %vm72, %v1478, 0
    %v1526 = vsel %vm72, %v1479, 0
    %1528 = vmatprep.subr.mxu0 0.0
    %1529 = vmatpush1.msra.mxu0 0.0
    %1530 = vmatprep.subr.mxu0 0.0
    %1531 = vmatpush1.msra.mxu0 0.0
    %1532 = vmatprep.subr.mxu0 0.0
    %1533 = vmatpush1.msra.mxu0 0.0
    %1534 = vmatprep.subr.mxu0 0.0
    %1535 = vmatpush1.msra.mxu0 0.0
    %1536 = vmatprep.subr.mxu0 0.0
    %1537 = vmatpush1.msra.mxu0 0.0
    %1538 = vmatprep.subr.mxu0 0.0
    %1539 = vmatpush1.msra.mxu0 0.0
    %1540 = vmatprep.subr.mxu0 0.0
    %1541 = vmatpush1.msra.mxu0 0.0
    %1542 = vmatprep.subr.mxu0 0.0
    %1543 = vmatpush1.msra.mxu0 0.0
    %1544 = vmatprep.subr.mxu0 0.0
    %1545 = vmatpush1.msra.mxu0 %v1460
    %1546 = vmatprep.subr.mxu0 0.0
    %1547 = vmatpush1.msra.mxu0 %v1455
    %1548 = vmatprep.subr.mxu0 0.0
    %1549 = vmatpush1.msra.mxu0 %v1450
    %1550 = vmatprep.subr.mxu0 0.0
    %1551 = vmatpush1.msra.mxu0 %v1445
    %1552 = vmatprep.subr.mxu0 0.0
    %1553 = vmatpush1.msra.mxu0 %v1440
    %1554 = vmatprep.subr.mxu0 0.0
    %1555 = vmatpush1.msra.mxu0 %v1435
    %1556 = vmatprep.subr.mxu0 0.0
    %1557 = vmatpush1.msra.mxu0 %v1430
    %1558 = vmatprep.subr.mxu0 0.0
    %1559 = vmatpush1.msra.mxu0 %v1425
    %1560 = vmatprep.subr.mxu0 0.0
    %1561 = vmatpush2.msra.mxu0 0.0
    %1562 = vmatprep.subr.mxu0 0.0
    %1563 = vmatpush2.msra.mxu0 0.0
    %1564 = vmatprep.subr.mxu0 0.0
    %1565 = vmatpush2.msra.mxu0 0.0
    %1566 = vmatprep.subr.mxu0 0.0
    %1567 = vmatpush2.msra.mxu0 0.0
    %1568 = vmatprep.subr.mxu0 0.0
    %1569 = vmatpush2.msra.mxu0 0.0
    %1570 = vmatprep.subr.mxu0 0.0
    %1571 = vmatpush2.msra.mxu0 0.0
    %1572 = vmatprep.subr.mxu0 0.0
    %1573 = vmatpush2.msra.mxu0 0.0
    %1574 = vmatprep.subr.mxu0 0.0
    %1575 = vmatpush2.msra.mxu0 0.0
    %1576 = vmatprep.subr.mxu0 0.0
    %1577 = vmatpush2.msra.mxu0 0.0
    %1578 = vmatprep.subr.mxu0 0.0
    %1579 = vmatpush2.msra.mxu0 0.0
    %1580 = vmatprep.subr.mxu0 0.0
    %1581 = vmatpush2.msra.mxu0 0.0
    %1582 = vmatprep.subr.mxu0 0.0
    %1583 = vmatpush2.msra.mxu0 0.0
    %1584 = vmatprep.subr.mxu0 0.0
    %1585 = vmatpush2.msra.mxu0 0.0
    %1586 = vmatprep.subr.mxu0 0.0
    %1587 = vmatpush2.msra.mxu0 0.0
    %1588 = vmatprep.subr.mxu0 0.0
    %1589 = vmatpush2.msra.mxu0 0.0
    %1590 = vmatprep.subr.mxu0 0.0
    %1591 = vmatpush2.msra.mxu0 0.0
    %1592 = vmatprep.mubr.f32.mxu0 0.0
    %1593 = vmatmul.mubr.f32.gmra.mxu0 %v1481
    %v1594 = vpop.f32.mrf.mxu0
    %v1595 = vadd.f32 0.0, %v1594
    %v1596 = vpop.f32.mrf.mxu0
    %1597 = vmatprep.mubr.f32.mxu0 0.0
    %1598 = vmatmul.mubr.f32.gmra.mxu0 %v1484
    %v1599 = vpop.f32.mrf.mxu0
    %v1600 = vadd.f32 0.0, %v1599
    %v1601 = vpop.f32.mrf.mxu0
    %1602 = vmatprep.mubr.f32.mxu0 0.0
    %1603 = vmatmul.mubr.f32.gmra.mxu0 %v1487
    %v1604 = vpop.f32.mrf.mxu0
    %v1605 = vadd.f32 0.0, %v1604
    %v1606 = vpop.f32.mrf.mxu0
    %1607 = vmatprep.mubr.f32.mxu0 0.0
    %1608 = vmatmul.mubr.f32.gmra.mxu0 %v1490
    %v1609 = vpop.f32.mrf.mxu0
    %v1610 = vadd.f32 0.0, %v1609
    %v1611 = vpop.f32.mrf.mxu0
    %1612 = vmatprep.mubr.f32.mxu0 0.0
    %1613 = vmatmul.mubr.f32.gmra.mxu0 %v1493
    %v1614 = vpop.f32.mrf.mxu0
    %v1615 = vadd.f32 0.0, %v1614
    %v1616 = vpop.f32.mrf.mxu0
    %1617 = vmatprep.mubr.f32.mxu0 0.0
    %1618 = vmatmul.mubr.f32.gmra.mxu0 %v1496
    %v1619 = vpop.f32.mrf.mxu0
    %v1620 = vadd.f32 0.0, %v1619
    %v1621 = vpop.f32.mrf.mxu0
    %1622 = vmatprep.mubr.f32.mxu0 0.0
    %1623 = vmatmul.mubr.f32.gmra.mxu0 %v1499
    %v1624 = vpop.f32.mrf.mxu0
    %v1625 = vadd.f32 0.0, %v1624
    %v1626 = vpop.f32.mrf.mxu0
    %1627 = vmatprep.mubr.f32.mxu0 0.0
    %1628 = vmatmul.mubr.f32.gmra.mxu0 %v1502
    %v1629 = vpop.f32.mrf.mxu0
    %v1630 = vadd.f32 0.0, %v1629
    %v1631 = vpop.f32.mrf.mxu0
    %1632 = vmatprep.mubr.f32.mxu0 0.0
    %1633 = vmatmul.mubr.f32.gmra.mxu0 %v1505
    %v1634 = vpop.f32.mrf.mxu0
    %v1635 = vadd.f32 0.0, %v1634
    %v1636 = vpop.f32.mrf.mxu0
    %1637 = vmatprep.mubr.f32.mxu0 0.0
    %1638 = vmatmul.mubr.f32.gmra.mxu0 %v1508
    %v1639 = vpop.f32.mrf.mxu0
    %v1640 = vadd.f32 0.0, %v1639
    %v1641 = vpop.f32.mrf.mxu0
    %1642 = vmatprep.mubr.f32.mxu0 0.0
    %1643 = vmatmul.mubr.f32.gmra.mxu0 %v1511
    %v1644 = vpop.f32.mrf.mxu0
    %v1645 = vadd.f32 0.0, %v1644
    %v1646 = vpop.f32.mrf.mxu0
    %1647 = vmatprep.mubr.f32.mxu0 0.0
    %1648 = vmatmul.mubr.f32.gmra.mxu0 %v1514
    %v1649 = vpop.f32.mrf.mxu0
    %v1650 = vadd.f32 0.0, %v1649
    %v1651 = vpop.f32.mrf.mxu0
    %1652 = vmatprep.mubr.f32.mxu0 0.0
    %1653 = vmatmul.mubr.f32.gmra.mxu0 %v1517
    %v1654 = vpop.f32.mrf.mxu0
    %v1655 = vadd.f32 0.0, %v1654
    %v1656 = vpop.f32.mrf.mxu0
    %1657 = vmatprep.mubr.f32.mxu0 0.0
    %1658 = vmatmul.mubr.f32.gmra.mxu0 %v1520
    %v1659 = vpop.f32.mrf.mxu0
    %v1660 = vadd.f32 0.0, %v1659
    %v1661 = vpop.f32.mrf.mxu0
    %1662 = vmatprep.mubr.f32.mxu0 0.0
    %1663 = vmatmul.mubr.f32.gmra.mxu0 %v1523
    %v1664 = vpop.f32.mrf.mxu0
    %v1665 = vadd.f32 0.0, %v1664
    %v1666 = vpop.f32.mrf.mxu0
    %1667 = vmatprep.mubr.f32.mxu0 0.0
    %1668 = vmatmul.mubr.f32.gmra.mxu0 %v1526
    %v1669 = vpop.f32.mrf.mxu0
    %v1670 = vadd.f32 0.0, %v1669
    %v1671 = vpop.f32.mrf.mxu0
    %1672 = vdwg.mxu0
    %v1673 = vadd.f32 %v1317, %v1595
    %v1674 = vadd.f32 %v1318, %v1600
    %v1675 = vadd.f32 %v1319, %v1605
    %v1676 = vadd.f32 %v1320, %v1610
    %v1677 = vadd.f32 %v1321, %v1615
    %v1678 = vadd.f32 %v1322, %v1620
    %v1679 = vadd.f32 %v1323, %v1625
    %v1680 = vadd.f32 %v1324, %v1630
    %v1681 = vadd.f32 %v1325, %v1635
    %v1682 = vadd.f32 %v1326, %v1640
    %v1683 = vadd.f32 %v1327, %v1645
    %v1684 = vadd.f32 %v1328, %v1650
    %v1685 = vadd.f32 %v1329, %v1655
    %v1686 = vadd.f32 %v1330, %v1660
    %v1687 = vadd.f32 %v1331, %v1665
    %v1688 = vadd.f32 %v1332, %v1670
    %v1689 = vadd.s32 %v37, 64
    %v1690 = vadd.s32 %v37, 72
    %v1691 = vadd.s32 %v37, 80
    %v1692 = vadd.s32 %v37, 88
    %v1693 = vadd.s32 %v37, 96
    %v1694 = vadd.s32 %v37, 104
    %v1695 = vadd.s32 %v37, 112
    %v1696 = vadd.s32 %v37, 120
    %vm1697 = vcmp.lt.s32.totalorder %v37, 64
    %vm1698 = vcmp.lt.s32.totalorder %v38, 64
    %vm1699 = vcmp.lt.s32.totalorder %v39, 64
    %vm1700 = vcmp.lt.s32.totalorder %v40, 64
    %vm1701 = vcmp.lt.s32.totalorder %v41, 64
    %vm1702 = vcmp.lt.s32.totalorder %v42, 64
    %vm1703 = vcmp.lt.s32.totalorder %v43, 64
    %vm1704 = vcmp.lt.s32.totalorder %v44, 64
    %vm1705 = vcmp.lt.s32.totalorder %v1689, 64
    %vm1706 = vcmp.lt.s32.totalorder %v1690, 64
    %vm1707 = vcmp.lt.s32.totalorder %v1691, 64
    %vm1708 = vcmp.lt.s32.totalorder %v1692, 64
    %vm1709 = vcmp.lt.s32.totalorder %v1693, 64
    %vm1710 = vcmp.lt.s32.totalorder %v1694, 64
    %vm1711 = vcmp.lt.s32.totalorder %v1695, 64
    %vm1712 = vcmp.lt.s32.totalorder %v1696, 64
    %s1713 = sld [smem:[#allocation2]]
    %s1714 = sld [smem:[#allocation2 + $0x1]]
    %v1715 = vstv %s1713
    %v1716 = vstv %s1714
    %v1717 = vsel %vm1697, %v1715, %v1716
    %v1718 = vsel %vm1698, %v1715, %v1716
    %v1719 = vsel %vm1699, %v1715, %v1716
    %v1720 = vsel %vm1700, %v1715, %v1716
    %v1721 = vsel %vm1701, %v1715, %v1716
    %v1722 = vsel %vm1702, %v1715, %v1716
    %v1723 = vsel %vm1703, %v1715, %v1716
    %v1724 = vsel %vm1704, %v1715, %v1716
    %v1725 = vsel %vm1705, %v1715, %v1716
    %v1726 = vsel %vm1706, %v1715, %v1716
    %v1727 = vsel %vm1707, %v1715, %v1716
    %v1728 = vsel %vm1708, %v1715, %v1716
    %v1729 = vsel %vm1709, %v1715, %v1716
    %v1730 = vsel %vm1710, %v1715, %v1716
    %v1731 = vsel %vm1711, %v1715, %v1716
    %v1732 = vsel %vm1712, %v1715, %v1716
    %v1733 = vadd.f32 %v1673, %v1717
    %v1734 = vadd.f32 %v1674, %v1718
    %v1735 = vadd.f32 %v1675, %v1719
    %v1736 = vadd.f32 %v1676, %v1720
    %v1737 = vadd.f32 %v1677, %v1721
    %v1738 = vadd.f32 %v1678, %v1722
    %v1739 = vadd.f32 %v1679, %v1723
    %v1740 = vadd.f32 %v1680, %v1724
    %v1741 = vadd.f32 %v1681, %v1725
    %v1742 = vadd.f32 %v1682, %v1726
    %v1743 = vadd.f32 %v1683, %v1727
    %v1744 = vadd.f32 %v1684, %v1728
    %v1745 = vadd.f32 %v1685, %v1729
    %v1746 = vadd.f32 %v1686, %v1730
    %v1747 = vadd.f32 %v1687, %v1731
    %v1748 = vadd.f32 %v1688, %v1732
    %v1749 = vmul.f32 %v1733, 5.0
    %v1750 = vmul.f32 %v1734, 5.0
    %v1751 = vmul.f32 %v1735, 5.0
    %v1752 = vmul.f32 %v1736, 5.0
    %v1753 = vmul.f32 %v1737, 5.0
    %v1754 = vmul.f32 %v1738, 5.0
    %v1755 = vmul.f32 %v1739, 5.0
    %v1756 = vmul.f32 %v1740, 5.0
    %v1757 = vmul.f32 %v1741, 5.0
    %v1758 = vmul.f32 %v1742, 5.0
    %v1759 = vmul.f32 %v1743, 5.0
    %v1760 = vmul.f32 %v1744, 5.0
    %v1761 = vmul.f32 %v1745, 5.0
    %v1762 = vmul.f32 %v1746, 5.0
    %v1763 = vmul.f32 %v1747, 5.0
    %v1764 = vmul.f32 %v1748, 5.0
    %v1765 = vmax.f32 %v1749, 0.0
    %v1766 = vmax.f32 %v1750, 0.0
    %v1767 = vmax.f32 %v1751, 0.0
    %v1768 = vmax.f32 %v1752, 0.0
    %v1769 = vmax.f32 %v1753, 0.0
    %v1770 = vmax.f32 %v1754, 0.0
    %v1771 = vmax.f32 %v1755, 0.0
    %v1772 = vmax.f32 %v1756, 0.0
    %v1773 = vmax.f32 %v1757, 0.0
    %v1774 = vmax.f32 %v1758, 0.0
    %v1775 = vmax.f32 %v1759, 0.0
    %v1776 = vmax.f32 %v1760, 0.0
    %v1777 = vmax.f32 %v1761, 0.0
    %v1778 = vmax.f32 %v1762, 0.0
    %v1779 = vmax.f32 %v1763, 0.0
    %v1780 = vmax.f32 %v1764, 0.0
    %1781 = vst.msk [vmem:[#allocation5] sm:$0xff] %vm72, %v1765
    %1782 = vst.msk [vmem:[#allocation5 + $0x8] sm:$0xff] %vm72, %v1766
    %1783 = vst.msk [vmem:[#allocation5 + $0x10] sm:$0xff] %vm72, %v1767
    %1784 = vst.msk [vmem:[#allocation5 + $0x18] sm:$0xff] %vm72, %v1768
    %1785 = vst.msk [vmem:[#allocation5 + $0x20] sm:$0xff] %vm72, %v1769
    %1786 = vst.msk [vmem:[#allocation5 + $0x28] sm:$0xff] %vm72, %v1770
    %1787 = vst.msk [vmem:[#allocation5 + $0x30] sm:$0xff] %vm72, %v1771
    %1788 = vst.msk [vmem:[#allocation5 + $0x38] sm:$0xff] %vm72, %v1772
    %s1789 = scalar_lea.vmem [#allocation5], 64
    %1790 = vst.msk [vmem:[%s1789] sm:$0xff] %vm72, %v1773
    %1791 = vst.msk [vmem:[%s1789 + $0x8] sm:$0xff] %vm72, %v1774
    %1792 = vst.msk [vmem:[%s1789 + $0x10] sm:$0xff] %vm72, %v1775
    %1793 = vst.msk [vmem:[%s1789 + $0x18] sm:$0xff] %vm72, %v1776
    %1794 = vst.msk [vmem:[%s1789 + $0x20] sm:$0xff] %vm72, %v1777
    %1795 = vst.msk [vmem:[%s1789 + $0x28] sm:$0xff] %vm72, %v1778
    %1796 = vst.msk [vmem:[%s1789 + $0x30] sm:$0xff] %vm72, %v1779
    %1797 = vst.msk [vmem:[%s1789 + $0x38] sm:$0xff] %vm72, %v1780
    // Predicated region
    $region18: #{model_forward.1} parent=1 // pred_check
      _
    $region19: #{model_forward.1} parent=1 // pred_check_branch
      %1799 = sbr.rel (0) target = $region21
    $region20: #{model_forward.1} parent=1 // pred_region
      %s1801 = ssub.s32 2048, 2048
      %1802 = vsyncadd [#allocation3], %s1801
      %s1803 = sshll.u32 [#allocation5], 4
      %s1804 = int_to_ptr.vmem [resolvable:$true] %s1803
      %1809 = dma.vmem_to_hbm [thread:$0]  %s1804, 2048, %s3, [#allocation3], 128, 128, 8
    $region21: #{model_forward.1} parent=1 // pred_fallthru
      _
    // Predicated region
    $region22: #{model_forward.1} parent=1 // pred_check
      _
    $region23: #{model_forward.1} parent=1 // pred_check_branch
      %1811 = sbr.rel (0) target = $region25
    $region24: #{model_forward.1} parent=1 // pred_region
      %1812 = dma.done [#allocation3], 2048
    $region25: #{model_forward.1} parent=1 // pred_fallthru
      _
    %1813 = vsyncpa [#allocation3], 1
    %1814 = vsyncpa [#allocation4], 1

</llo_original>
